<compile_context>
chip_gen: v7x
topology: tpu7x:2x2x1
jax: 0.10.0
libtpu: 0.0.40
codegen_flags: <defaults>
</compile_context>

<pallas_src>
import jax
import jax.numpy as jnp
from jax.experimental import pallas as pl
from jax.experimental.pallas import tpu as pltpu


# ------------------------------ Fused kernel ---------------------------------
def make_fused_lstm_kernel(num_layers, T, B, H, O):
    """Build the fused kernel for fixed static shapes.

    Ref layout (inputs..., output):
      x_ref:        (T*B, D)   time-major, batch-padded, flattened input
      per layer:    w_ih (D_l, 4H), w_hh (H, 4H), b (1, 4H)   [gate order i,f,g,o]
      w_lin, b_lin: (H, O), (1, O)
      out_ref:      (B, O)
    """

    def kernel(*refs):
        x_ref = refs[0]
        layer_refs = refs[1:1 + 3 * num_layers]
        w_lin_ref = refs[1 + 3 * num_layers]
        b_lin_ref = refs[2 + 3 * num_layers]
        out_ref = refs[3 + 3 * num_layers]

        # Lane mask selecting the "g" (cell candidate) columns [2H, 3H) of the
        # 4H-wide gate axis: tanh there, sigmoid everywhere else.
        lane = jax.lax.broadcasted_iota(jnp.int32, (B, 4 * H), 1)
        g_mask = (lane >= 2 * H) & (lane < 3 * H)

        seq_in = x_ref[...]                                     # (T*B, D_in)
        h = None
        for layer in range(num_layers):
            w_ih = layer_refs[3 * layer][...]                   # (D_l, 4H)
            w_hh = layer_refs[3 * layer + 1][...]               # (H, 4H)
            b = layer_refs[3 * layer + 2][...]                  # (1, 4H)

            # Hoisted input projection for the WHOLE sequence: one MXU matmul.
            xp = jnp.dot(seq_in, w_ih,
                         preferred_element_type=jnp.float32) + b  # (T*B, 4H)

            h = jnp.zeros((B, H), jnp.float32)
            c = jnp.zeros((B, H), jnp.float32)
            hs = []
            for t in range(T):                                  # static unroll
                gates = xp[t * B:(t + 1) * B, :] + jnp.dot(
                    h, w_hh, preferred_element_type=jnp.float32)  # (B, 4H)
                sig = jax.nn.sigmoid(gates)                     # full-vreg EUP
                tah = jnp.tanh(gates)                           # full-vreg EUP
                act = jnp.where(g_mask, tah, sig)
                i_g = act[:, 0 * H:1 * H]
                f_g = act[:, 1 * H:2 * H]
                g_g = act[:, 2 * H:3 * H]
                o_g = act[:, 3 * H:4 * H]
                c = f_g * c + i_g * g_g
                h = o_g * jnp.tanh(c)
                if layer + 1 < num_layers:
                    hs.append(h)
            if layer + 1 < num_layers:
                # Inter-layer activations stay on-chip (never touch HBM).
                seq_in = jnp.concatenate(hs, axis=0)            # (T*B, H)

        # Final Linear on the top layer's last hidden state, fused in-kernel.
        out_ref[...] = (jnp.dot(h, w_lin_ref[...],
                                preferred_element_type=jnp.float32)
                        + b_lin_ref[...])

    return kernel


# -------------------------------- Wrapper -------------------------------------
def lstm_model_forward(x, lstm_params, w_lin, b_lin):
    """x: (B, T, D) batch_first (like PyTorch). Returns (B, output_dim)."""
    B, T, D = x.shape
    H = lstm_params[0][1].shape[0]
    O = w_lin.shape[1]
    num_layers = len(lstm_params)

    # Pad batch to a multiple of 8 sublanes; lay out time-major (row = t*Bp + b).
    Bp = ((B + 7) // 8) * 8
    x_tm = jnp.transpose(x, (1, 0, 2))                 # (T, B, D)
    if Bp != B:
        x_tm = jnp.pad(x_tm, ((0, 0), (0, Bp - B), (0, 0)))
    x_flat = x_tm.reshape(T * Bp, D)

    args = [x_flat]
    for (w_ih, w_hh, b) in lstm_params:
        args.extend([w_ih, w_hh, b])
    args.extend([w_lin, b_lin])

    kernel = make_fused_lstm_kernel(num_layers, T, Bp, H, O)
    out = pl.pallas_call(
        kernel,
        out_shape=jax.ShapeDtypeStruct((Bp, O), jnp.float32),
        in_specs=[pl.BlockSpec(memory_space=pltpu.MemorySpace.VMEM)
                  for _ in args],
        out_specs=pl.BlockSpec(memory_space=pltpu.MemorySpace.VMEM),
    )(*args)
    return out[:B]


# ---------------------------- Pure-JAX reference -------------------------------
def lstm_model_ref(x, lstm_params, w_lin, b_lin):
    B, T, _ = x.shape
    h_in = x
    for (w_ih, w_hh, b) in lstm_params:
        H = w_hh.shape[0]
        h = jnp.zeros((B, H), jnp.float32)
        c = jnp.zeros((B, H), jnp.float32)
        outs = []
        for t in range(T):
            gates = h_in[:, t, :] @ w_ih + h @ w_hh + b
            i_g = jax.nn.sigmoid(gates[:, :H])
            f_g = jax.nn.sigmoid(gates[:, H:2 * H])
            g_g = jnp.tanh(gates[:, 2 * H:3 * H])
            o_g = jax.nn.sigmoid(gates[:, 3 * H:])
            c = f_g * c + i_g * g_g
            h = o_g * jnp.tanh(c)
            outs.append(h)
        h_in = jnp.stack(outs, axis=1)
    return h_in[:, -1, :] @ w_lin + b_lin


# ---------------------------------- Main ---------------------------------------
if __name__ == "__main__":
    # Hyperparameters implied by LSTMModel(__init__)
    input_dim = 4
    hidden_dim = 32
    num_layers = 2
    output_dim = 3
    batch = 2
    seq = 8

    key = jax.random.PRNGKey(0)
    scale = 1.0 / jnp.sqrt(hidden_dim)     # PyTorch-style uniform(-1/sqrt(H), 1/sqrt(H))

    lstm_params = []
    in_dim = input_dim
    for layer in range(num_layers):
        key, k1, k2, k3, k4 = jax.random.split(key, 5)
        # PyTorch stores weight_ih_l{k}: (4H, in_dim); we keep the transposed
        # (in_dim, 4H) layout the kernel consumes. Gate order [i, f, g, o].
        w_ih = jax.random.uniform(k1, (in_dim, 4 * hidden_dim),
                                  jnp.float32, -scale, scale)
        w_hh = jax.random.uniform(k2, (hidden_dim, 4 * hidden_dim),
                                  jnp.float32, -scale, scale)
        b_ih = jax.random.uniform(k3, (4 * hidden_dim,), jnp.float32, -scale, scale)
        b_hh = jax.random.uniform(k4, (4 * hidden_dim,), jnp.float32, -scale, scale)
        b = (b_ih + b_hh).reshape(1, 4 * hidden_dim)
        lstm_params.append((w_ih, w_hh, b))
        in_dim = hidden_dim

    key, kw, kb, kx = jax.random.split(key, 4)
    lin_scale = 1.0 / jnp.sqrt(hidden_dim)
    w_lin = jax.random.uniform(kw, (hidden_dim, output_dim),
                               jnp.float32, -lin_scale, lin_scale)
    b_lin = jax.random.uniform(kb, (1, output_dim), jnp.float32, -lin_scale, lin_scale)

    x = jax.random.normal(kx, (batch, seq, input_dim), jnp.float32)

    fwd = jax.jit(lstm_model_forward)
    out = fwd(x, lstm_params, w_lin, b_lin)
    out = jax.block_until_ready(out)

    ref = lstm_model_ref(x, lstm_params, w_lin, b_lin)
    assert out.shape == (batch, output_dim)
    assert jnp.allclose(out, ref, atol=1e-5, rtol=1e-5)

    print("KERNEL_OK")
</pallas_src>

<mosaic_0001>
module attributes {stable_mosaic.version = 11 : i64} {
  func.func @kernel(%arg0: memref<64x4xf32, #tpu.memory_space<vmem>>, %arg1: memref<4x128xf32, #tpu.memory_space<vmem>>, %arg2: memref<32x128xf32, #tpu.memory_space<vmem>>, %arg3: memref<1x128xf32, #tpu.memory_space<vmem>>, %arg4: memref<32x128xf32, #tpu.memory_space<vmem>>, %arg5: memref<32x128xf32, #tpu.memory_space<vmem>>, %arg6: memref<1x128xf32, #tpu.memory_space<vmem>>, %arg7: memref<32x3xf32, #tpu.memory_space<vmem>>, %arg8: memref<1x3xf32, #tpu.memory_space<vmem>>, %arg9: memref<8x3xf32, #tpu.memory_space<vmem>>) attributes {dimension_semantics = [], scalar_prefetch = 0 : i64, scratch_operands = 0 : i64, tpu.core_type = #tpu.core_type<tc>} {
    %0 = tpu.iota {dimensions = array<i32: 1>} : vector<8x128xi32>
    %c64_i32 = arith.constant 64 : i32
    %1 = vector.broadcast %c64_i32 : i32 to vector<8x128xi32>
    %2 = arith.cmpi sge, %0, %1 : vector<8x128xi32>
    %c96_i32 = arith.constant 96 : i32
    %3 = vector.broadcast %c96_i32 : i32 to vector<8x128xi32>
    %4 = arith.cmpi slt, %0, %3 : vector<8x128xi32>
    %5 = arith.andi %2, %4 : vector<8x128xi1>
    %c0 = arith.constant 0 : index
    %c0_0 = arith.constant 0 : index
    %6 = vector.load %arg0[%c0, %c0_0] : memref<64x4xf32, #tpu.memory_space<vmem>>, vector<64x4xf32>
    %c0_1 = arith.constant 0 : index
    %c0_2 = arith.constant 0 : index
    %7 = vector.load %arg1[%c0_1, %c0_2] : memref<4x128xf32, #tpu.memory_space<vmem>>, vector<4x128xf32>
    %c0_3 = arith.constant 0 : index
    %c0_4 = arith.constant 0 : index
    %8 = vector.load %arg2[%c0_3, %c0_4] : memref<32x128xf32, #tpu.memory_space<vmem>>, vector<32x128xf32>
    %c0_5 = arith.constant 0 : index
    %c0_6 = arith.constant 0 : index
    %9 = vector.load %arg3[%c0_5, %c0_6] : memref<1x128xf32, #tpu.memory_space<vmem>>, vector<1x128xf32>
    %cst = arith.constant dense<0.000000e+00> : vector<64x128xf32>
    %10 = tpu.matmul %6, %7, %cst {dimension_numbers = #tpu.dot_dimension_numbers<[1], [0], [0], [1], [0, 0, 1, 1], [], []>} : vector<64x4xf32>, vector<4x128xf32>, vector<64x128xf32> -> vector<64x128xf32>
    %11 = vector.broadcast %9 : vector<1x128xf32> to vector<64x128xf32>
    %12 = arith.addf %10, %11 : vector<64x128xf32>
    %cst_7 = arith.constant 0.000000e+00 : f32
    %13 = vector.broadcast %cst_7 : f32 to vector<8x32xf32>
    %cst_8 = arith.constant 0.000000e+00 : f32
    %14 = vector.broadcast %cst_8 : f32 to vector<8x32xf32>
    %15 = vector.extract_strided_slice %12 {offsets = [0, 0], sizes = [8, 128], strides = [1, 1]} : vector<64x128xf32> to vector<8x128xf32>
    %cst_9 = arith.constant dense<0.000000e+00> : vector<8x128xf32>
    %16 = tpu.matmul %13, %8, %cst_9 {dimension_numbers = #tpu.dot_dimension_numbers<[1], [0], [0], [1], [0, 0, 1, 1], [], []>} : vector<8x32xf32>, vector<32x128xf32>, vector<8x128xf32> -> vector<8x128xf32>
    %17 = arith.addf %15, %16 : vector<8x128xf32>
    %18 = arith.negf %17 : vector<8x128xf32>
    %19 = math.exp %18 : vector<8x128xf32>
    %cst_10 = arith.constant 1.000000e+00 : f32
    %20 = vector.broadcast %cst_10 : f32 to vector<8x128xf32>
    %21 = arith.addf %20, %19 : vector<8x128xf32>
    %22 = arith.divf %20, %21 : vector<8x128xf32>
    %23 = math.tanh %17 : vector<8x128xf32>
    %24 = arith.select %5, %23, %22 : vector<8x128xi1>, vector<8x128xf32>
    %25 = vector.extract_strided_slice %24 {offsets = [0, 0], sizes = [8, 32], strides = [1, 1]} : vector<8x128xf32> to vector<8x32xf32>
    %26 = vector.extract_strided_slice %24 {offsets = [0, 32], sizes = [8, 32], strides = [1, 1]} : vector<8x128xf32> to vector<8x32xf32>
    %27 = vector.extract_strided_slice %24 {offsets = [0, 64], sizes = [8, 32], strides = [1, 1]} : vector<8x128xf32> to vector<8x32xf32>
    %28 = vector.extract_strided_slice %24 {offsets = [0, 96], sizes = [8, 32], strides = [1, 1]} : vector<8x128xf32> to vector<8x32xf32>
    %29 = arith.mulf %26, %14 : vector<8x32xf32>
    %30 = arith.mulf %25, %27 : vector<8x32xf32>
    %31 = arith.addf %29, %30 : vector<8x32xf32>
    %32 = math.tanh %31 : vector<8x32xf32>
    %33 = arith.mulf %28, %32 : vector<8x32xf32>
    %34 = vector.extract_strided_slice %12 {offsets = [8, 0], sizes = [8, 128], strides = [1, 1]} : vector<64x128xf32> to vector<8x128xf32>
    %cst_11 = arith.constant dense<0.000000e+00> : vector<8x128xf32>
    %35 = tpu.matmul %33, %8, %cst_11 {dimension_numbers = #tpu.dot_dimension_numbers<[1], [0], [0], [1], [0, 0, 1, 1], [], []>} : vector<8x32xf32>, vector<32x128xf32>, vector<8x128xf32> -> vector<8x128xf32>
    %36 = arith.addf %34, %35 : vector<8x128xf32>
    %37 = arith.negf %36 : vector<8x128xf32>
    %38 = math.exp %37 : vector<8x128xf32>
    %cst_12 = arith.constant 1.000000e+00 : f32
    %39 = vector.broadcast %cst_12 : f32 to vector<8x128xf32>
    %40 = arith.addf %39, %38 : vector<8x128xf32>
    %41 = arith.divf %39, %40 : vector<8x128xf32>
    %42 = math.tanh %36 : vector<8x128xf32>
    %43 = arith.select %5, %42, %41 : vector<8x128xi1>, vector<8x128xf32>
    %44 = vector.extract_strided_slice %43 {offsets = [0, 0], sizes = [8, 32], strides = [1, 1]} : vector<8x128xf32> to vector<8x32xf32>
    %45 = vector.extract_strided_slice %43 {offsets = [0, 32], sizes = [8, 32], strides = [1, 1]} : vector<8x128xf32> to vector<8x32xf32>
    %46 = vector.extract_strided_slice %43 {offsets = [0, 64], sizes = [8, 32], strides = [1, 1]} : vector<8x128xf32> to vector<8x32xf32>
    %47 = vector.extract_strided_slice %43 {offsets = [0, 96], sizes = [8, 32], strides = [1, 1]} : vector<8x128xf32> to vector<8x32xf32>
    %48 = arith.mulf %45, %31 : vector<8x32xf32>
    %49 = arith.mulf %44, %46 : vector<8x32xf32>
    %50 = arith.addf %48, %49 : vector<8x32xf32>
    %51 = math.tanh %50 : vector<8x32xf32>
    %52 = arith.mulf %47, %51 : vector<8x32xf32>
    %53 = vector.extract_strided_slice %12 {offsets = [16, 0], sizes = [8, 128], strides = [1, 1]} : vector<64x128xf32> to vector<8x128xf32>
    %cst_13 = arith.constant dense<0.000000e+00> : vector<8x128xf32>
    %54 = tpu.matmul %52, %8, %cst_13 {dimension_numbers = #tpu.dot_dimension_numbers<[1], [0], [0], [1], [0, 0, 1, 1], [], []>} : vector<8x32xf32>, vector<32x128xf32>, vector<8x128xf32> -> vector<8x128xf32>
    %55 = arith.addf %53, %54 : vector<8x128xf32>
    %56 = arith.negf %55 : vector<8x128xf32>
    %57 = math.exp %56 : vector<8x128xf32>
    %cst_14 = arith.constant 1.000000e+00 : f32
    %58 = vector.broadcast %cst_14 : f32 to vector<8x128xf32>
    %59 = arith.addf %58, %57 : vector<8x128xf32>
    %60 = arith.divf %58, %59 : vector<8x128xf32>
    %61 = math.tanh %55 : vector<8x128xf32>
    %62 = arith.select %5, %61, %60 : vector<8x128xi1>, vector<8x128xf32>
    %63 = vector.extract_strided_slice %62 {offsets = [0, 0], sizes = [8, 32], strides = [1, 1]} : vector<8x128xf32> to vector<8x32xf32>
    %64 = vector.extract_strided_slice %62 {offsets = [0, 32], sizes = [8, 32], strides = [1, 1]} : vector<8x128xf32> to vector<8x32xf32>
    %65 = vector.extract_strided_slice %62 {offsets = [0, 64], sizes = [8, 32], strides = [1, 1]} : vector<8x128xf32> to vector<8x32xf32>
    %66 = vector.extract_strided_slice %62 {offsets = [0, 96], sizes = [8, 32], strides = [1, 1]} : vector<8x128xf32> to vector<8x32xf32>
    %67 = arith.mulf %64, %50 : vector<8x32xf32>
    %68 = arith.mulf %63, %65 : vector<8x32xf32>
    %69 = arith.addf %67, %68 : vector<8x32xf32>
    %70 = math.tanh %69 : vector<8x32xf32>
    %71 = arith.mulf %66, %70 : vector<8x32xf32>
    %72 = vector.extract_strided_slice %12 {offsets = [24, 0], sizes = [8, 128], strides = [1, 1]} : vector<64x128xf32> to vector<8x128xf32>
    %cst_15 = arith.constant dense<0.000000e+00> : vector<8x128xf32>
    %73 = tpu.matmul %71, %8, %cst_15 {dimension_numbers = #tpu.dot_dimension_numbers<[1], [0], [0], [1], [0, 0, 1, 1], [], []>} : vector<8x32xf32>, vector<32x128xf32>, vector<8x128xf32> -> vector<8x128xf32>
    %74 = arith.addf %72, %73 : vector<8x128xf32>
    %75 = arith.negf %74 : vector<8x128xf32>
    %76 = math.exp %75 : vector<8x128xf32>
    %cst_16 = arith.constant 1.000000e+00 : f32
    %77 = vector.broadcast %cst_16 : f32 to vector<8x128xf32>
    %78 = arith.addf %77, %76 : vector<8x128xf32>
    %79 = arith.divf %77, %78 : vector<8x128xf32>
    %80 = math.tanh %74 : vector<8x128xf32>
    %81 = arith.select %5, %80, %79 : vector<8x128xi1>, vector<8x128xf32>
    %82 = vector.extract_strided_slice %81 {offsets = [0, 0], sizes = [8, 32], strides = [1, 1]} : vector<8x128xf32> to vector<8x32xf32>
    %83 = vector.extract_strided_slice %81 {offsets = [0, 32], sizes = [8, 32], strides = [1, 1]} : vector<8x128xf32> to vector<8x32xf32>
    %84 = vector.extract_strided_slice %81 {offsets = [0, 64], sizes = [8, 32], strides = [1, 1]} : vector<8x128xf32> to vector<8x32xf32>
    %85 = vector.extract_strided_slice %81 {offsets = [0, 96], sizes = [8, 32], strides = [1, 1]} : vector<8x128xf32> to vector<8x32xf32>
    %86 = arith.mulf %83, %69 : vector<8x32xf32>
    %87 = arith.mulf %82, %84 : vector<8x32xf32>
    %88 = arith.addf %86, %87 : vector<8x32xf32>
    %89 = math.tanh %88 : vector<8x32xf32>
    %90 = arith.mulf %85, %89 : vector<8x32xf32>
    %91 = vector.extract_strided_slice %12 {offsets = [32, 0], sizes = [8, 128], strides = [1, 1]} : vector<64x128xf32> to vector<8x128xf32>
    %cst_17 = arith.constant dense<0.000000e+00> : vector<8x128xf32>
    %92 = tpu.matmul %90, %8, %cst_17 {dimension_numbers = #tpu.dot_dimension_numbers<[1], [0], [0], [1], [0, 0, 1, 1], [], []>} : vector<8x32xf32>, vector<32x128xf32>, vector<8x128xf32> -> vector<8x128xf32>
    %93 = arith.addf %91, %92 : vector<8x128xf32>
    %94 = arith.negf %93 : vector<8x128xf32>
    %95 = math.exp %94 : vector<8x128xf32>
    %cst_18 = arith.constant 1.000000e+00 : f32
    %96 = vector.broadcast %cst_18 : f32 to vector<8x128xf32>
    %97 = arith.addf %96, %95 : vector<8x128xf32>
    %98 = arith.divf %96, %97 : vector<8x128xf32>
    %99 = math.tanh %93 : vector<8x128xf32>
    %100 = arith.select %5, %99, %98 : vector<8x128xi1>, vector<8x128xf32>
    %101 = vector.extract_strided_slice %100 {offsets = [0, 0], sizes = [8, 32], strides = [1, 1]} : vector<8x128xf32> to vector<8x32xf32>
    %102 = vector.extract_strided_slice %100 {offsets = [0, 32], sizes = [8, 32], strides = [1, 1]} : vector<8x128xf32> to vector<8x32xf32>
    %103 = vector.extract_strided_slice %100 {offsets = [0, 64], sizes = [8, 32], strides = [1, 1]} : vector<8x128xf32> to vector<8x32xf32>
    %104 = vector.extract_strided_slice %100 {offsets = [0, 96], sizes = [8, 32], strides = [1, 1]} : vector<8x128xf32> to vector<8x32xf32>
    %105 = arith.mulf %102, %88 : vector<8x32xf32>
    %106 = arith.mulf %101, %103 : vector<8x32xf32>
    %107 = arith.addf %105, %106 : vector<8x32xf32>
    %108 = math.tanh %107 : vector<8x32xf32>
    %109 = arith.mulf %104, %108 : vector<8x32xf32>
    %110 = vector.extract_strided_slice %12 {offsets = [40, 0], sizes = [8, 128], strides = [1, 1]} : vector<64x128xf32> to vector<8x128xf32>
    %cst_19 = arith.constant dense<0.000000e+00> : vector<8x128xf32>
    %111 = tpu.matmul %109, %8, %cst_19 {dimension_numbers = #tpu.dot_dimension_numbers<[1], [0], [0], [1], [0, 0, 1, 1], [], []>} : vector<8x32xf32>, vector<32x128xf32>, vector<8x128xf32> -> vector<8x128xf32>
    %112 = arith.addf %110, %111 : vector<8x128xf32>
    %113 = arith.negf %112 : vector<8x128xf32>
    %114 = math.exp %113 : vector<8x128xf32>
    %cst_20 = arith.constant 1.000000e+00 : f32
    %115 = vector.broadcast %cst_20 : f32 to vector<8x128xf32>
    %116 = arith.addf %115, %114 : vector<8x128xf32>
    %117 = arith.divf %115, %116 : vector<8x128xf32>
    %118 = math.tanh %112 : vector<8x128xf32>
    %119 = arith.select %5, %118, %117 : vector<8x128xi1>, vector<8x128xf32>
    %120 = vector.extract_strided_slice %119 {offsets = [0, 0], sizes = [8, 32], strides = [1, 1]} : vector<8x128xf32> to vector<8x32xf32>
    %121 = vector.extract_strided_slice %119 {offsets = [0, 32], sizes = [8, 32], strides = [1, 1]} : vector<8x128xf32> to vector<8x32xf32>
    %122 = vector.extract_strided_slice %119 {offsets = [0, 64], sizes = [8, 32], strides = [1, 1]} : vector<8x128xf32> to vector<8x32xf32>
    %123 = vector.extract_strided_slice %119 {offsets = [0, 96], sizes = [8, 32], strides = [1, 1]} : vector<8x128xf32> to vector<8x32xf32>
    %124 = arith.mulf %121, %107 : vector<8x32xf32>
    %125 = arith.mulf %120, %122 : vector<8x32xf32>
    %126 = arith.addf %124, %125 : vector<8x32xf32>
    %127 = math.tanh %126 : vector<8x32xf32>
    %128 = arith.mulf %123, %127 : vector<8x32xf32>
    %129 = vector.extract_strided_slice %12 {offsets = [48, 0], sizes = [8, 128], strides = [1, 1]} : vector<64x128xf32> to vector<8x128xf32>
    %cst_21 = arith.constant dense<0.000000e+00> : vector<8x128xf32>
    %130 = tpu.matmul %128, %8, %cst_21 {dimension_numbers = #tpu.dot_dimension_numbers<[1], [0], [0], [1], [0, 0, 1, 1], [], []>} : vector<8x32xf32>, vector<32x128xf32>, vector<8x128xf32> -> vector<8x128xf32>
    %131 = arith.addf %129, %130 : vector<8x128xf32>
    %132 = arith.negf %131 : vector<8x128xf32>
    %133 = math.exp %132 : vector<8x128xf32>
    %cst_22 = arith.constant 1.000000e+00 : f32
    %134 = vector.broadcast %cst_22 : f32 to vector<8x128xf32>
    %135 = arith.addf %134, %133 : vector<8x128xf32>
    %136 = arith.divf %134, %135 : vector<8x128xf32>
    %137 = math.tanh %131 : vector<8x128xf32>
    %138 = arith.select %5, %137, %136 : vector<8x128xi1>, vector<8x128xf32>
    %139 = vector.extract_strided_slice %138 {offsets = [0, 0], sizes = [8, 32], strides = [1, 1]} : vector<8x128xf32> to vector<8x32xf32>
    %140 = vector.extract_strided_slice %138 {offsets = [0, 32], sizes = [8, 32], strides = [1, 1]} : vector<8x128xf32> to vector<8x32xf32>
    %141 = vector.extract_strided_slice %138 {offsets = [0, 64], sizes = [8, 32], strides = [1, 1]} : vector<8x128xf32> to vector<8x32xf32>
    %142 = vector.extract_strided_slice %138 {offsets = [0, 96], sizes = [8, 32], strides = [1, 1]} : vector<8x128xf32> to vector<8x32xf32>
    %143 = arith.mulf %140, %126 : vector<8x32xf32>
    %144 = arith.mulf %139, %141 : vector<8x32xf32>
    %145 = arith.addf %143, %144 : vector<8x32xf32>
    %146 = math.tanh %145 : vector<8x32xf32>
    %147 = arith.mulf %142, %146 : vector<8x32xf32>
    %148 = vector.extract_strided_slice %12 {offsets = [56, 0], sizes = [8, 128], strides = [1, 1]} : vector<64x128xf32> to vector<8x128xf32>
    %cst_23 = arith.constant dense<0.000000e+00> : vector<8x128xf32>
    %149 = tpu.matmul %147, %8, %cst_23 {dimension_numbers = #tpu.dot_dimension_numbers<[1], [0], [0], [1], [0, 0, 1, 1], [], []>} : vector<8x32xf32>, vector<32x128xf32>, vector<8x128xf32> -> vector<8x128xf32>
    %150 = arith.addf %148, %149 : vector<8x128xf32>
    %151 = arith.negf %150 : vector<8x128xf32>
    %152 = math.exp %151 : vector<8x128xf32>
    %cst_24 = arith.constant 1.000000e+00 : f32
    %153 = vector.broadcast %cst_24 : f32 to vector<8x128xf32>
    %154 = arith.addf %153, %152 : vector<8x128xf32>
    %155 = arith.divf %153, %154 : vector<8x128xf32>
    %156 = math.tanh %150 : vector<8x128xf32>
    %157 = arith.select %5, %156, %155 : vector<8x128xi1>, vector<8x128xf32>
    %158 = vector.extract_strided_slice %157 {offsets = [0, 0], sizes = [8, 32], strides = [1, 1]} : vector<8x128xf32> to vector<8x32xf32>
    %159 = vector.extract_strided_slice %157 {offsets = [0, 32], sizes = [8, 32], strides = [1, 1]} : vector<8x128xf32> to vector<8x32xf32>
    %160 = vector.extract_strided_slice %157 {offsets = [0, 64], sizes = [8, 32], strides = [1, 1]} : vector<8x128xf32> to vector<8x32xf32>
    %161 = vector.extract_strided_slice %157 {offsets = [0, 96], sizes = [8, 32], strides = [1, 1]} : vector<8x128xf32> to vector<8x32xf32>
    %162 = arith.mulf %159, %145 : vector<8x32xf32>
    %163 = arith.mulf %158, %160 : vector<8x32xf32>
    %164 = arith.addf %162, %163 : vector<8x32xf32>
    %165 = math.tanh %164 : vector<8x32xf32>
    %166 = arith.mulf %161, %165 : vector<8x32xf32>
    %167 = tpu.concatenate %33, %52, %71, %90, %109, %128, %147, %166 in 0 : vector<8x32xf32>, vector<8x32xf32>, vector<8x32xf32>, vector<8x32xf32>, vector<8x32xf32>, vector<8x32xf32>, vector<8x32xf32>, vector<8x32xf32> -> vector<64x32xf32>
    %c0_25 = arith.constant 0 : index
    %c0_26 = arith.constant 0 : index
    %168 = vector.load %arg4[%c0_25, %c0_26] : memref<32x128xf32, #tpu.memory_space<vmem>>, vector<32x128xf32>
    %c0_27 = arith.constant 0 : index
    %c0_28 = arith.constant 0 : index
    %169 = vector.load %arg5[%c0_27, %c0_28] : memref<32x128xf32, #tpu.memory_space<vmem>>, vector<32x128xf32>
    %c0_29 = arith.constant 0 : index
    %c0_30 = arith.constant 0 : index
    %170 = vector.load %arg6[%c0_29, %c0_30] : memref<1x128xf32, #tpu.memory_space<vmem>>, vector<1x128xf32>
    %cst_31 = arith.constant dense<0.000000e+00> : vector<64x128xf32>
    %171 = tpu.matmul %167, %168, %cst_31 {dimension_numbers = #tpu.dot_dimension_numbers<[1], [0], [0], [1], [0, 0, 1, 1], [], []>} : vector<64x32xf32>, vector<32x128xf32>, vector<64x128xf32> -> vector<64x128xf32>
    %172 = vector.broadcast %170 : vector<1x128xf32> to vector<64x128xf32>
    %173 = arith.addf %171, %172 : vector<64x128xf32>
    %cst_32 = arith.constant 0.000000e+00 : f32
    %174 = vector.broadcast %cst_32 : f32 to vector<8x32xf32>
    %cst_33 = arith.constant 0.000000e+00 : f32
    %175 = vector.broadcast %cst_33 : f32 to vector<8x32xf32>
    %176 = vector.extract_strided_slice %173 {offsets = [0, 0], sizes = [8, 128], strides = [1, 1]} : vector<64x128xf32> to vector<8x128xf32>
    %cst_34 = arith.constant dense<0.000000e+00> : vector<8x128xf32>
    %177 = tpu.matmul %174, %169, %cst_34 {dimension_numbers = #tpu.dot_dimension_numbers<[1], [0], [0], [1], [0, 0, 1, 1], [], []>} : vector<8x32xf32>, vector<32x128xf32>, vector<8x128xf32> -> vector<8x128xf32>
    %178 = arith.addf %176, %177 : vector<8x128xf32>
    %179 = arith.negf %178 : vector<8x128xf32>
    %180 = math.exp %179 : vector<8x128xf32>
    %cst_35 = arith.constant 1.000000e+00 : f32
    %181 = vector.broadcast %cst_35 : f32 to vector<8x128xf32>
    %182 = arith.addf %181, %180 : vector<8x128xf32>
    %183 = arith.divf %181, %182 : vector<8x128xf32>
    %184 = math.tanh %178 : vector<8x128xf32>
    %185 = arith.select %5, %184, %183 : vector<8x128xi1>, vector<8x128xf32>
    %186 = vector.extract_strided_slice %185 {offsets = [0, 0], sizes = [8, 32], strides = [1, 1]} : vector<8x128xf32> to vector<8x32xf32>
    %187 = vector.extract_strided_slice %185 {offsets = [0, 32], sizes = [8, 32], strides = [1, 1]} : vector<8x128xf32> to vector<8x32xf32>
    %188 = vector.extract_strided_slice %185 {offsets = [0, 64], sizes = [8, 32], strides = [1, 1]} : vector<8x128xf32> to vector<8x32xf32>
    %189 = vector.extract_strided_slice %185 {offsets = [0, 96], sizes = [8, 32], strides = [1, 1]} : vector<8x128xf32> to vector<8x32xf32>
    %190 = arith.mulf %187, %175 : vector<8x32xf32>
    %191 = arith.mulf %186, %188 : vector<8x32xf32>
    %192 = arith.addf %190, %191 : vector<8x32xf32>
    %193 = math.tanh %192 : vector<8x32xf32>
    %194 = arith.mulf %189, %193 : vector<8x32xf32>
    %195 = vector.extract_strided_slice %173 {offsets = [8, 0], sizes = [8, 128], strides = [1, 1]} : vector<64x128xf32> to vector<8x128xf32>
    %cst_36 = arith.constant dense<0.000000e+00> : vector<8x128xf32>
    %196 = tpu.matmul %194, %169, %cst_36 {dimension_numbers = #tpu.dot_dimension_numbers<[1], [0], [0], [1], [0, 0, 1, 1], [], []>} : vector<8x32xf32>, vector<32x128xf32>, vector<8x128xf32> -> vector<8x128xf32>
    %197 = arith.addf %195, %196 : vector<8x128xf32>
    %198 = arith.negf %197 : vector<8x128xf32>
    %199 = math.exp %198 : vector<8x128xf32>
    %cst_37 = arith.constant 1.000000e+00 : f32
    %200 = vector.broadcast %cst_37 : f32 to vector<8x128xf32>
    %201 = arith.addf %200, %199 : vector<8x128xf32>
    %202 = arith.divf %200, %201 : vector<8x128xf32>
    %203 = math.tanh %197 : vector<8x128xf32>
    %204 = arith.select %5, %203, %202 : vector<8x128xi1>, vector<8x128xf32>
    %205 = vector.extract_strided_slice %204 {offsets = [0, 0], sizes = [8, 32], strides = [1, 1]} : vector<8x128xf32> to vector<8x32xf32>
    %206 = vector.extract_strided_slice %204 {offsets = [0, 32], sizes = [8, 32], strides = [1, 1]} : vector<8x128xf32> to vector<8x32xf32>
    %207 = vector.extract_strided_slice %204 {offsets = [0, 64], sizes = [8, 32], strides = [1, 1]} : vector<8x128xf32> to vector<8x32xf32>
    %208 = vector.extract_strided_slice %204 {offsets = [0, 96], sizes = [8, 32], strides = [1, 1]} : vector<8x128xf32> to vector<8x32xf32>
    %209 = arith.mulf %206, %192 : vector<8x32xf32>
    %210 = arith.mulf %205, %207 : vector<8x32xf32>
    %211 = arith.addf %209, %210 : vector<8x32xf32>
    %212 = math.tanh %211 : vector<8x32xf32>
    %213 = arith.mulf %208, %212 : vector<8x32xf32>
    %214 = vector.extract_strided_slice %173 {offsets = [16, 0], sizes = [8, 128], strides = [1, 1]} : vector<64x128xf32> to vector<8x128xf32>
    %cst_38 = arith.constant dense<0.000000e+00> : vector<8x128xf32>
    %215 = tpu.matmul %213, %169, %cst_38 {dimension_numbers = #tpu.dot_dimension_numbers<[1], [0], [0], [1], [0, 0, 1, 1], [], []>} : vector<8x32xf32>, vector<32x128xf32>, vector<8x128xf32> -> vector<8x128xf32>
    %216 = arith.addf %214, %215 : vector<8x128xf32>
    %217 = arith.negf %216 : vector<8x128xf32>
    %218 = math.exp %217 : vector<8x128xf32>
    %cst_39 = arith.constant 1.000000e+00 : f32
    %219 = vector.broadcast %cst_39 : f32 to vector<8x128xf32>
    %220 = arith.addf %219, %218 : vector<8x128xf32>
    %221 = arith.divf %219, %220 : vector<8x128xf32>
    %222 = math.tanh %216 : vector<8x128xf32>
    %223 = arith.select %5, %222, %221 : vector<8x128xi1>, vector<8x128xf32>
    %224 = vector.extract_strided_slice %223 {offsets = [0, 0], sizes = [8, 32], strides = [1, 1]} : vector<8x128xf32> to vector<8x32xf32>
    %225 = vector.extract_strided_slice %223 {offsets = [0, 32], sizes = [8, 32], strides = [1, 1]} : vector<8x128xf32> to vector<8x32xf32>
    %226 = vector.extract_strided_slice %223 {offsets = [0, 64], sizes = [8, 32], strides = [1, 1]} : vector<8x128xf32> to vector<8x32xf32>
    %227 = vector.extract_strided_slice %223 {offsets = [0, 96], sizes = [8, 32], strides = [1, 1]} : vector<8x128xf32> to vector<8x32xf32>
    %228 = arith.mulf %225, %211 : vector<8x32xf32>
    %229 = arith.mulf %224, %226 : vector<8x32xf32>
    %230 = arith.addf %228, %229 : vector<8x32xf32>
    %231 = math.tanh %230 : vector<8x32xf32>
    %232 = arith.mulf %227, %231 : vector<8x32xf32>
    %233 = vector.extract_strided_slice %173 {offsets = [24, 0], sizes = [8, 128], strides = [1, 1]} : vector<64x128xf32> to vector<8x128xf32>
    %cst_40 = arith.constant dense<0.000000e+00> : vector<8x128xf32>
    %234 = tpu.matmul %232, %169, %cst_40 {dimension_numbers = #tpu.dot_dimension_numbers<[1], [0], [0], [1], [0, 0, 1, 1], [], []>} : vector<8x32xf32>, vector<32x128xf32>, vector<8x128xf32> -> vector<8x128xf32>
    %235 = arith.addf %233, %234 : vector<8x128xf32>
    %236 = arith.negf %235 : vector<8x128xf32>
    %237 = math.exp %236 : vector<8x128xf32>
    %cst_41 = arith.constant 1.000000e+00 : f32
    %238 = vector.broadcast %cst_41 : f32 to vector<8x128xf32>
    %239 = arith.addf %238, %237 : vector<8x128xf32>
    %240 = arith.divf %238, %239 : vector<8x128xf32>
    %241 = math.tanh %235 : vector<8x128xf32>
    %242 = arith.select %5, %241, %240 : vector<8x128xi1>, vector<8x128xf32>
    %243 = vector.extract_strided_slice %242 {offsets = [0, 0], sizes = [8, 32], strides = [1, 1]} : vector<8x128xf32> to vector<8x32xf32>
    %244 = vector.extract_strided_slice %242 {offsets = [0, 32], sizes = [8, 32], strides = [1, 1]} : vector<8x128xf32> to vector<8x32xf32>
    %245 = vector.extract_strided_slice %242 {offsets = [0, 64], sizes = [8, 32], strides = [1, 1]} : vector<8x128xf32> to vector<8x32xf32>
    %246 = vector.extract_strided_slice %242 {offsets = [0, 96], sizes = [8, 32], strides = [1, 1]} : vector<8x128xf32> to vector<8x32xf32>
    %247 = arith.mulf %244, %230 : vector<8x32xf32>
    %248 = arith.mulf %243, %245 : vector<8x32xf32>
    %249 = arith.addf %247, %248 : vector<8x32xf32>
    %250 = math.tanh %249 : vector<8x32xf32>
    %251 = arith.mulf %246, %250 : vector<8x32xf32>
    %252 = vector.extract_strided_slice %173 {offsets = [32, 0], sizes = [8, 128], strides = [1, 1]} : vector<64x128xf32> to vector<8x128xf32>
    %cst_42 = arith.constant dense<0.000000e+00> : vector<8x128xf32>
    %253 = tpu.matmul %251, %169, %cst_42 {dimension_numbers = #tpu.dot_dimension_numbers<[1], [0], [0], [1], [0, 0, 1, 1], [], []>} : vector<8x32xf32>, vector<32x128xf32>, vector<8x128xf32> -> vector<8x128xf32>
    %254 = arith.addf %252, %253 : vector<8x128xf32>
    %255 = arith.negf %254 : vector<8x128xf32>
    %256 = math.exp %255 : vector<8x128xf32>
    %cst_43 = arith.constant 1.000000e+00 : f32
    %257 = vector.broadcast %cst_43 : f32 to vector<8x128xf32>
    %258 = arith.addf %257, %256 : vector<8x128xf32>
    %259 = arith.divf %257, %258 : vector<8x128xf32>
    %260 = math.tanh %254 : vector<8x128xf32>
    %261 = arith.select %5, %260, %259 : vector<8x128xi1>, vector<8x128xf32>
    %262 = vector.extract_strided_slice %261 {offsets = [0, 0], sizes = [8, 32], strides = [1, 1]} : vector<8x128xf32> to vector<8x32xf32>
    %263 = vector.extract_strided_slice %261 {offsets = [0, 32], sizes = [8, 32], strides = [1, 1]} : vector<8x128xf32> to vector<8x32xf32>
    %264 = vector.extract_strided_slice %261 {offsets = [0, 64], sizes = [8, 32], strides = [1, 1]} : vector<8x128xf32> to vector<8x32xf32>
    %265 = vector.extract_strided_slice %261 {offsets = [0, 96], sizes = [8, 32], strides = [1, 1]} : vector<8x128xf32> to vector<8x32xf32>
    %266 = arith.mulf %263, %249 : vector<8x32xf32>
    %267 = arith.mulf %262, %264 : vector<8x32xf32>
    %268 = arith.addf %266, %267 : vector<8x32xf32>
    %269 = math.tanh %268 : vector<8x32xf32>
    %270 = arith.mulf %265, %269 : vector<8x32xf32>
    %271 = vector.extract_strided_slice %173 {offsets = [40, 0], sizes = [8, 128], strides = [1, 1]} : vector<64x128xf32> to vector<8x128xf32>
    %cst_44 = arith.constant dense<0.000000e+00> : vector<8x128xf32>
    %272 = tpu.matmul %270, %169, %cst_44 {dimension_numbers = #tpu.dot_dimension_numbers<[1], [0], [0], [1], [0, 0, 1, 1], [], []>} : vector<8x32xf32>, vector<32x128xf32>, vector<8x128xf32> -> vector<8x128xf32>
    %273 = arith.addf %271, %272 : vector<8x128xf32>
    %274 = arith.negf %273 : vector<8x128xf32>
    %275 = math.exp %274 : vector<8x128xf32>
    %cst_45 = arith.constant 1.000000e+00 : f32
    %276 = vector.broadcast %cst_45 : f32 to vector<8x128xf32>
    %277 = arith.addf %276, %275 : vector<8x128xf32>
    %278 = arith.divf %276, %277 : vector<8x128xf32>
    %279 = math.tanh %273 : vector<8x128xf32>
    %280 = arith.select %5, %279, %278 : vector<8x128xi1>, vector<8x128xf32>
    %281 = vector.extract_strided_slice %280 {offsets = [0, 0], sizes = [8, 32], strides = [1, 1]} : vector<8x128xf32> to vector<8x32xf32>
    %282 = vector.extract_strided_slice %280 {offsets = [0, 32], sizes = [8, 32], strides = [1, 1]} : vector<8x128xf32> to vector<8x32xf32>
    %283 = vector.extract_strided_slice %280 {offsets = [0, 64], sizes = [8, 32], strides = [1, 1]} : vector<8x128xf32> to vector<8x32xf32>
    %284 = vector.extract_strided_slice %280 {offsets = [0, 96], sizes = [8, 32], strides = [1, 1]} : vector<8x128xf32> to vector<8x32xf32>
    %285 = arith.mulf %282, %268 : vector<8x32xf32>
    %286 = arith.mulf %281, %283 : vector<8x32xf32>
    %287 = arith.addf %285, %286 : vector<8x32xf32>
    %288 = math.tanh %287 : vector<8x32xf32>
    %289 = arith.mulf %284, %288 : vector<8x32xf32>
    %290 = vector.extract_strided_slice %173 {offsets = [48, 0], sizes = [8, 128], strides = [1, 1]} : vector<64x128xf32> to vector<8x128xf32>
    %cst_46 = arith.constant dense<0.000000e+00> : vector<8x128xf32>
    %291 = tpu.matmul %289, %169, %cst_46 {dimension_numbers = #tpu.dot_dimension_numbers<[1], [0], [0], [1], [0, 0, 1, 1], [], []>} : vector<8x32xf32>, vector<32x128xf32>, vector<8x128xf32> -> vector<8x128xf32>
    %292 = arith.addf %290, %291 : vector<8x128xf32>
    %293 = arith.negf %292 : vector<8x128xf32>
    %294 = math.exp %293 : vector<8x128xf32>
    %cst_47 = arith.constant 1.000000e+00 : f32
    %295 = vector.broadcast %cst_47 : f32 to vector<8x128xf32>
    %296 = arith.addf %295, %294 : vector<8x128xf32>
    %297 = arith.divf %295, %296 : vector<8x128xf32>
    %298 = math.tanh %292 : vector<8x128xf32>
    %299 = arith.select %5, %298, %297 : vector<8x128xi1>, vector<8x128xf32>
    %300 = vector.extract_strided_slice %299 {offsets = [0, 0], sizes = [8, 32], strides = [1, 1]} : vector<8x128xf32> to vector<8x32xf32>
    %301 = vector.extract_strided_slice %299 {offsets = [0, 32], sizes = [8, 32], strides = [1, 1]} : vector<8x128xf32> to vector<8x32xf32>
    %302 = vector.extract_strided_slice %299 {offsets = [0, 64], sizes = [8, 32], strides = [1, 1]} : vector<8x128xf32> to vector<8x32xf32>
    %303 = vector.extract_strided_slice %299 {offsets = [0, 96], sizes = [8, 32], strides = [1, 1]} : vector<8x128xf32> to vector<8x32xf32>
    %304 = arith.mulf %301, %287 : vector<8x32xf32>
    %305 = arith.mulf %300, %302 : vector<8x32xf32>
    %306 = arith.addf %304, %305 : vector<8x32xf32>
    %307 = math.tanh %306 : vector<8x32xf32>
    %308 = arith.mulf %303, %307 : vector<8x32xf32>
    %309 = vector.extract_strided_slice %173 {offsets = [56, 0], sizes = [8, 128], strides = [1, 1]} : vector<64x128xf32> to vector<8x128xf32>
    %cst_48 = arith.constant dense<0.000000e+00> : vector<8x128xf32>
    %310 = tpu.matmul %308, %169, %cst_48 {dimension_numbers = #tpu.dot_dimension_numbers<[1], [0], [0], [1], [0, 0, 1, 1], [], []>} : vector<8x32xf32>, vector<32x128xf32>, vector<8x128xf32> -> vector<8x128xf32>
    %311 = arith.addf %309, %310 : vector<8x128xf32>
    %312 = arith.negf %311 : vector<8x128xf32>
    %313 = math.exp %312 : vector<8x128xf32>
    %cst_49 = arith.constant 1.000000e+00 : f32
    %314 = vector.broadcast %cst_49 : f32 to vector<8x128xf32>
    %315 = arith.addf %314, %313 : vector<8x128xf32>
    %316 = arith.divf %314, %315 : vector<8x128xf32>
    %317 = math.tanh %311 : vector<8x128xf32>
    %318 = arith.select %5, %317, %316 : vector<8x128xi1>, vector<8x128xf32>
    %319 = vector.extract_strided_slice %318 {offsets = [0, 0], sizes = [8, 32], strides = [1, 1]} : vector<8x128xf32> to vector<8x32xf32>
    %320 = vector.extract_strided_slice %318 {offsets = [0, 32], sizes = [8, 32], strides = [1, 1]} : vector<8x128xf32> to vector<8x32xf32>
    %321 = vector.extract_strided_slice %318 {offsets = [0, 64], sizes = [8, 32], strides = [1, 1]} : vector<8x128xf32> to vector<8x32xf32>
    %322 = vector.extract_strided_slice %318 {offsets = [0, 96], sizes = [8, 32], strides = [1, 1]} : vector<8x128xf32> to vector<8x32xf32>
    %323 = arith.mulf %320, %306 : vector<8x32xf32>
    %324 = arith.mulf %319, %321 : vector<8x32xf32>
    %325 = arith.addf %323, %324 : vector<8x32xf32>
    %326 = math.tanh %325 : vector<8x32xf32>
    %327 = arith.mulf %322, %326 : vector<8x32xf32>
    %c0_50 = arith.constant 0 : index
    %c0_51 = arith.constant 0 : index
    %328 = vector.load %arg7[%c0_50, %c0_51] : memref<32x3xf32, #tpu.memory_space<vmem>>, vector<32x3xf32>
    %cst_52 = arith.constant dense<0.000000e+00> : vector<8x3xf32>
    %329 = tpu.matmul %327, %328, %cst_52 {dimension_numbers = #tpu.dot_dimension_numbers<[1], [0], [0], [1], [0, 0, 1, 1], [], []>} : vector<8x32xf32>, vector<32x3xf32>, vector<8x3xf32> -> vector<8x3xf32>
    %c0_53 = arith.constant 0 : index
    %c0_54 = arith.constant 0 : index
    %330 = vector.load %arg8[%c0_53, %c0_54] : memref<1x3xf32, #tpu.memory_space<vmem>>, vector<1x3xf32>
    %331 = vector.broadcast %330 : vector<1x3xf32> to vector<8x3xf32>
    %332 = arith.addf %329, %331 : vector<8x3xf32>
    %c0_55 = arith.constant 0 : index
    %c0_56 = arith.constant 0 : index
    %333 = vector.load %arg9[%c0_55, %c0_56] : memref<8x3xf32, #tpu.memory_space<vmem>>, vector<8x3xf32>
    tpu.vector_store %arg9[%c0_55, %c0_56], %332 {strides = array<i32>} : memref<8x3xf32, #tpu.memory_space<vmem>>, vector<8x3xf32>,
    return
  }
}

</mosaic_0001>

<llo_original>
// kernel: lstm_model_forward.1
$region0: #{lstm_model_forward.1}
  #allocation0 [shape = 'u32[]', space=smem, size = 0x4, offset = 0x4, fixed_abs, tag = 'smem constant byte address 0x4 - core index']
  #allocation1 [shape = 'u32[144,128]{1,0:T(1,128)}', space=vmem, size = 0x12000, scoped, tag = 'internal scratch']
  %s0 = inlined_call_operand.vmem [shape: f32[64,4], index: 0, kind: input, shape index: {}]
  %s1 = inlined_call_operand.vmem [shape: f32[4,128], index: 1, kind: input, shape index: {}]
  %s2 = inlined_call_operand.vmem [shape: f32[32,128], index: 2, kind: input, shape index: {}]
  %s3 = inlined_call_operand.vmem [shape: f32[1,128], index: 3, kind: input, shape index: {}]
  %s4 = inlined_call_operand.vmem [shape: f32[32,128], index: 4, kind: input, shape index: {}]
  %s5 = inlined_call_operand.vmem [shape: f32[32,128], index: 5, kind: input, shape index: {}]
  %s6 = inlined_call_operand.vmem [shape: f32[1,128], index: 6, kind: input, shape index: {}]
  %s7 = inlined_call_operand.vmem [shape: f32[32,3], index: 7, kind: input, shape index: {}]
  %s8 = inlined_call_operand.vmem [shape: f32[1,3], index: 8, kind: input, shape index: {}]
  %s9 = inlined_call_operand.vmem [shape: f32[8,3], index: 9, kind: output, shape index: {}]
  %s10 = sld [smem:[#allocation0]]
  $region46: #{lstm_model_forward.1} parent=0
    _
  %s12 = ssub.s32 1, %s10
  %s13 = scalar_select 0, %s12, %s10
  // Predicated region
  $region2: #{lstm_model_forward.1} parent=0 // pred_check
    _
  $region3: #{lstm_model_forward.1} parent=0 // pred_check_branch
    %15 = sbr.rel (0) target = $region5
  $region4: #{lstm_model_forward.1} parent=0 // pred_region
    _
  $region5: #{lstm_model_forward.1} parent=0 // pred_fallthru
    _
  // Predicated region
  $region6: #{lstm_model_forward.1} parent=0 // pred_check
    _
  $region7: #{lstm_model_forward.1} parent=0 // pred_check_branch
    %17 = sbr.rel (0) target = $region9
  $region8: #{lstm_model_forward.1} parent=0 // pred_region
    _
  $region9: #{lstm_model_forward.1} parent=0 // pred_fallthru
    _
  // Predicated region
  $region10: #{lstm_model_forward.1} parent=0 // pred_check
    _
  $region11: #{lstm_model_forward.1} parent=0 // pred_check_branch
    %19 = sbr.rel (0) target = $region13
  $region12: #{lstm_model_forward.1} parent=0 // pred_region
    _
  $region13: #{lstm_model_forward.1} parent=0 // pred_fallthru
    _
  // Predicated region
  $region14: #{lstm_model_forward.1} parent=0 // pred_check
    _
  $region15: #{lstm_model_forward.1} parent=0 // pred_check_branch
    %21 = sbr.rel (0) target = $region17
  $region16: #{lstm_model_forward.1} parent=0 // pred_region
    _
  $region17: #{lstm_model_forward.1} parent=0 // pred_fallthru
    _
  // Predicated region
  $region18: #{lstm_model_forward.1} parent=0 // pred_check
    _
  $region19: #{lstm_model_forward.1} parent=0 // pred_check_branch
    %23 = sbr.rel (0) target = $region21
  $region20: #{lstm_model_forward.1} parent=0 // pred_region
    _
  $region21: #{lstm_model_forward.1} parent=0 // pred_fallthru
    _
  // Predicated region
  $region22: #{lstm_model_forward.1} parent=0 // pred_check
    _
  $region23: #{lstm_model_forward.1} parent=0 // pred_check_branch
    %25 = sbr.rel (0) target = $region25
  $region24: #{lstm_model_forward.1} parent=0 // pred_region
    _
  $region25: #{lstm_model_forward.1} parent=0 // pred_fallthru
    _
  // Predicated region
  $region26: #{lstm_model_forward.1} parent=0 // pred_check
    _
  $region27: #{lstm_model_forward.1} parent=0 // pred_check_branch
    %27 = sbr.rel (0) target = $region29
  $region28: #{lstm_model_forward.1} parent=0 // pred_region
    _
  $region29: #{lstm_model_forward.1} parent=0 // pred_fallthru
    _
  // Predicated region
  $region30: #{lstm_model_forward.1} parent=0 // pred_check
    _
  $region31: #{lstm_model_forward.1} parent=0 // pred_check_branch
    %29 = sbr.rel (0) target = $region33
  $region32: #{lstm_model_forward.1} parent=0 // pred_region
    _
  $region33: #{lstm_model_forward.1} parent=0 // pred_fallthru
    _
  // Predicated region
  $region34: #{lstm_model_forward.1} parent=0 // pred_check
    _
  $region35: #{lstm_model_forward.1} parent=0 // pred_check_branch
    %31 = sbr.rel (0) target = $region37
  $region36: #{lstm_model_forward.1} parent=0 // pred_region
    _
  $region37: #{lstm_model_forward.1} parent=0 // pred_fallthru
    _
  %v32 = vlaneseq
  %v33 = vand.u32 %v32, 127
  %vm34 = vcmp.ge.s32.totalorder %v33, 64
  %vm35 = vcmp.lt.s32.totalorder %v33, 96
  %vm36 = vmand %vm34, %vm35
  %v37 = vld [vmem:[%s0] sm:$0xff]
  %v38 = vld [vmem:[%s0 + $0x8] sm:$0xff]
  %v39 = vld [vmem:[%s0 + $0x10] sm:$0xff]
  %v40 = vld [vmem:[%s0 + $0x18] sm:$0xff]
  %v41 = vld [vmem:[%s0 + $0x20] sm:$0xff]
  %v42 = vld [vmem:[%s0 + $0x28] sm:$0xff]
  %v43 = vld [vmem:[%s0 + $0x30] sm:$0xff]
  %v44 = vld [vmem:[%s0 + $0x38] sm:$0xff]
  %v45 = vld [vmem:[%s1] sm:$0xf]
  %v46 = vld [vmem:[%s2] sm:$0xff]
  %v47 = vld [vmem:[%s2 + $0x8] sm:$0xff]
  %v48 = vld [vmem:[%s2 + $0x10] sm:$0xff]
  %v49 = vld [vmem:[%s2 + $0x18] sm:$0xff]
  %v50 = vld [vmem:[%s3] sm:$0x1]
  %v52 = vlaneseq
  %v53 = vshrl.u32 %v52, 7
  %v54 = vsub.s32 0, %v53
  %v55 = vrot.slane %v50, %v54
  %vm57 = vcmask 31744
  %v59 = vsel %vm57, %v37, 0
  %v62 = vsel %vm57, %v38, 0
  %v65 = vsel %vm57, %v39, 0
  %v68 = vsel %vm57, %v40, 0
  %v71 = vsel %vm57, %v41, 0
  %v74 = vsel %vm57, %v42, 0
  %v77 = vsel %vm57, %v43, 0
  %v80 = vsel %vm57, %v44, 0
  %vm82 = vcmask 1043456
  %v84 = vsel %vm82, %v45, 0
  %86 = vmatprep.subr.mxu0 0.0
  %87 = vmatpush1.msra.mxu0 %v84
  %88 = vmatprep.subr.mxu0 0.0
  %89 = vmatpush1.msra.mxu0 0.0
  %90 = vmatprep.subr.mxu0 0.0
  %91 = vmatpush1.msra.mxu0 0.0
  %92 = vmatprep.subr.mxu0 0.0
  %93 = vmatpush1.msra.mxu0 0.0
  %94 = vmatprep.subr.mxu0 0.0
  %95 = vmatpush1.msra.mxu0 0.0
  %96 = vmatprep.subr.mxu0 0.0
  %97 = vmatpush1.msra.mxu0 0.0
  %98 = vmatprep.subr.mxu0 0.0
  %99 = vmatpush1.msra.mxu0 0.0
  %100 = vmatprep.subr.mxu0 0.0
  %101 = vmatpush1.msra.mxu0 0.0
  %102 = vmatprep.subr.mxu0 0.0
  %103 = vmatpush1.msra.mxu0 0.0
  %104 = vmatprep.subr.mxu0 0.0
  %105 = vmatpush1.msra.mxu0 0.0
  %106 = vmatprep.subr.mxu0 0.0
  %107 = vmatpush1.msra.mxu0 0.0
  %108 = vmatprep.subr.mxu0 0.0
  %109 = vmatpush1.msra.mxu0 0.0
  %110 = vmatprep.subr.mxu0 0.0
  %111 = vmatpush1.msra.mxu0 0.0
  %112 = vmatprep.subr.mxu0 0.0
  %113 = vmatpush1.msra.mxu0 0.0
  %114 = vmatprep.subr.mxu0 0.0
  %115 = vmatpush1.msra.mxu0 0.0
  %116 = vmatprep.subr.mxu0 0.0
  %117 = vmatpush1.msra.mxu0 0.0
  %118 = vmatprep.subr.mxu0 0.0
  %119 = vmatpush1.msra.mxu0 0.0
  %120 = vmatprep.subr.mxu0 0.0
  %121 = vmatpush1.msra.mxu0 0.0
  %122 = vmatprep.subr.mxu0 0.0
  %123 = vmatpush1.msra.mxu0 0.0
  %124 = vmatprep.subr.mxu0 0.0
  %125 = vmatpush1.msra.mxu0 0.0
  %126 = vmatprep.subr.mxu0 0.0
  %127 = vmatpush1.msra.mxu0 0.0
  %128 = vmatprep.subr.mxu0 0.0
  %129 = vmatpush1.msra.mxu0 0.0
  %130 = vmatprep.subr.mxu0 0.0
  %131 = vmatpush1.msra.mxu0 0.0
  %132 = vmatprep.subr.mxu0 0.0
  %133 = vmatpush1.msra.mxu0 0.0
  %134 = vmatprep.subr.mxu0 0.0
  %135 = vmatpush1.msra.mxu0 0.0
  %136 = vmatprep.subr.mxu0 0.0
  %137 = vmatpush1.msra.mxu0 0.0
  %138 = vmatprep.subr.mxu0 0.0
  %139 = vmatpush1.msra.mxu0 0.0
  %140 = vmatprep.subr.mxu0 0.0
  %141 = vmatpush1.msra.mxu0 0.0
  %142 = vmatprep.subr.mxu0 0.0
  %143 = vmatpush1.msra.mxu0 0.0
  %144 = vmatprep.subr.mxu0 0.0
  %145 = vmatpush1.msra.mxu0 0.0
  %146 = vmatprep.subr.mxu0 0.0
  %147 = vmatpush1.msra.mxu0 0.0
  %148 = vmatprep.subr.mxu0 0.0
  %149 = vmatpush1.msra.mxu0 0.0
  %150 = vmatprep.mubr.f32.mxu0 0.0
  %151 = vmatmul.mubr.f32.gmra.mrb[0].mxu0 %v59
  %v152 = vpop.f32.mrb[0].mxu0
  %v153 = vadd.f32 %v55, %v152
  %v154 = vpop.f32.mrb[0].mxu0
  %155 = vmatprep.mubr.f32.mxu0 0.0
  %156 = vmatmul.mubr.f32.gmra.mrb[0].mxu0 %v62
  %v157 = vpop.f32.mrb[0].mxu0
  %v158 = vadd.f32 %v55, %v157
  %v159 = vpop.f32.mrb[0].mxu0
  %160 = vmatprep.mubr.f32.mxu0 0.0
  %161 = vmatmul.mubr.f32.gmra.mrb[0].mxu0 %v65
  %v162 = vpop.f32.mrb[0].mxu0
  %v163 = vadd.f32 %v55, %v162
  %v164 = vpop.f32.mrb[0].mxu0
  %165 = vmatprep.mubr.f32.mxu0 0.0
  %166 = vmatmul.mubr.f32.gmra.mrb[0].mxu0 %v68
  %v167 = vpop.f32.mrb[0].mxu0
  %v168 = vadd.f32 %v55, %v167
  %v169 = vpop.f32.mrb[0].mxu0
  %170 = vmatprep.mubr.f32.mxu0 0.0
  %171 = vmatmul.mubr.f32.gmra.mrb[0].mxu0 %v71
  %v172 = vpop.f32.mrb[0].mxu0
  %v173 = vadd.f32 %v55, %v172
  %v174 = vpop.f32.mrb[0].mxu0
  %175 = vmatprep.mubr.f32.mxu0 0.0
  %176 = vmatmul.mubr.f32.gmra.mrb[0].mxu0 %v74
  %v177 = vpop.f32.mrb[0].mxu0
  %v178 = vadd.f32 %v55, %v177
  %v179 = vpop.f32.mrb[0].mxu0
  %180 = vmatprep.mubr.f32.mxu0 0.0
  %181 = vmatmul.mubr.f32.gmra.mrb[0].mxu0 %v77
  %v182 = vpop.f32.mrb[0].mxu0
  %v183 = vadd.f32 %v55, %v182
  %v184 = vpop.f32.mrb[0].mxu0
  %185 = vmatprep.mubr.f32.mxu0 0.0
  %186 = vmatmul.mubr.f32.gmra.mrb[0].mxu0 %v80
  %v187 = vpop.f32.mrb[0].mxu0
  %v188 = vadd.f32 %v55, %v187
  %v189 = vpop.f32.mrb[0].mxu0
  %190 = vdwg.mxu0
  %vm191 = vcmask 261120
  %v193 = vsel %vm191, 0.0, 0
  %195 = vmatprep.subr.mxu0 0.0
  %196 = vmatpush1.msra.mxu0 %v46
  %197 = vmatprep.subr.mxu0 0.0
  %198 = vmatpush1.msra.mxu0 %v47
  %199 = vmatprep.subr.mxu0 0.0
  %200 = vmatpush1.msra.mxu0 %v48
  %201 = vmatprep.subr.mxu0 0.0
  %202 = vmatpush1.msra.mxu0 %v49
  %203 = vmatprep.subr.mxu0 0.0
  %204 = vmatpush1.msra.mxu0 0.0
  %205 = vmatprep.subr.mxu0 0.0
  %206 = vmatpush1.msra.mxu0 0.0
  %207 = vmatprep.subr.mxu0 0.0
  %208 = vmatpush1.msra.mxu0 0.0
  %209 = vmatprep.subr.mxu0 0.0
  %210 = vmatpush1.msra.mxu0 0.0
  %211 = vmatprep.subr.mxu0 0.0
  %212 = vmatpush1.msra.mxu0 0.0
  %213 = vmatprep.subr.mxu0 0.0
  %214 = vmatpush1.msra.mxu0 0.0
  %215 = vmatprep.subr.mxu0 0.0
  %216 = vmatpush1.msra.mxu0 0.0
  %217 = vmatprep.subr.mxu0 0.0
  %218 = vmatpush1.msra.mxu0 0.0
  %219 = vmatprep.subr.mxu0 0.0
  %220 = vmatpush1.msra.mxu0 0.0
  %221 = vmatprep.subr.mxu0 0.0
  %222 = vmatpush1.msra.mxu0 0.0
  %223 = vmatprep.subr.mxu0 0.0
  %224 = vmatpush1.msra.mxu0 0.0
  %225 = vmatprep.subr.mxu0 0.0
  %226 = vmatpush1.msra.mxu0 0.0
  %227 = vmatprep.subr.mxu0 0.0
  %228 = vmatpush1.msra.mxu0 0.0
  %229 = vmatprep.subr.mxu0 0.0
  %230 = vmatpush1.msra.mxu0 0.0
  %231 = vmatprep.subr.mxu0 0.0
  %232 = vmatpush1.msra.mxu0 0.0
  %233 = vmatprep.subr.mxu0 0.0
  %234 = vmatpush1.msra.mxu0 0.0
  %235 = vmatprep.subr.mxu0 0.0
  %236 = vmatpush1.msra.mxu0 0.0
  %237 = vmatprep.subr.mxu0 0.0
  %238 = vmatpush1.msra.mxu0 0.0
  %239 = vmatprep.subr.mxu0 0.0
  %240 = vmatpush1.msra.mxu0 0.0
  %241 = vmatprep.subr.mxu0 0.0
  %242 = vmatpush1.msra.mxu0 0.0
  %243 = vmatprep.subr.mxu0 0.0
  %244 = vmatpush1.msra.mxu0 0.0
  %245 = vmatprep.subr.mxu0 0.0
  %246 = vmatpush1.msra.mxu0 0.0
  %247 = vmatprep.subr.mxu0 0.0
  %248 = vmatpush1.msra.mxu0 0.0
  %249 = vmatprep.subr.mxu0 0.0
  %250 = vmatpush1.msra.mxu0 0.0
  %251 = vmatprep.subr.mxu0 0.0
  %252 = vmatpush1.msra.mxu0 0.0
  %253 = vmatprep.subr.mxu0 0.0
  %254 = vmatpush1.msra.mxu0 0.0
  %255 = vmatprep.subr.mxu0 0.0
  %256 = vmatpush1.msra.mxu0 0.0
  %257 = vmatprep.subr.mxu0 0.0
  %258 = vmatpush1.msra.mxu0 0.0
  %259 = vmatprep.mubr.f32.mxu0 0.0
  %260 = vmatmul.mubr.f32.gmra.mrb[0].mxu0 %v193
  %v261 = vpop.f32.mrb[0].mxu0
  %v262 = vadd.f32 0.0, %v261
  %v263 = vpop.f32.mrb[0].mxu0
  %264 = vdwg.mxu0
  %v265 = vadd.f32 %v153, %v262
  %v266 = vxor.u32 %v265, 2147483648
  %v267 = vmul.f32 %v266, 1.442695
  %v268 = vpow.pop %v267
  %v269 = vadd.f32 %v268, 1.0
  %v270 = vrcp.pop %v269
  %v271 = vmul.f32 1.0, %v270
  %v272 = vtanh.pop %v265
  %v273 = vsel %vm36, %v272, %v271
  %v274 = vmul.f32 %v273, 0.0
  %276 = vrot.lane.b32.xlu0 %v273, 64
  %v277 = vpop.permute.xlu0 %276
  %v279 = vmul.f32 %v273, %v277
  %281 = vrot.lane.b32.xlu0 %v279, 32
  %v282 = vpop.permute.xlu0 %281
  %v284 = vadd.f32 %v274, %v282
  %v285 = vtanh.pop %v284
  %287 = vrot.lane.b32.xlu0 %v285, 64
  %v288 = vpop.permute.xlu0 %287
  %v290 = vmul.f32 %v273, %v288
  %292 = vrot.lane.b32.xlu0 %v290, 32
  %v293 = vpop.permute.xlu0 %292
  %v294 = vsel %vm191, %v293, 0
  %296 = vmatprep.subr.mxu0 0.0
  %297 = vmatpush1.msra.mxu0 %v46
  %298 = vmatprep.subr.mxu0 0.0
  %299 = vmatpush1.msra.mxu0 %v47
  %300 = vmatprep.subr.mxu0 0.0
  %301 = vmatpush1.msra.mxu0 %v48
  %302 = vmatprep.subr.mxu0 0.0
  %303 = vmatpush1.msra.mxu0 %v49
  %304 = vmatprep.subr.mxu0 0.0
  %305 = vmatpush1.msra.mxu0 0.0
  %306 = vmatprep.subr.mxu0 0.0
  %307 = vmatpush1.msra.mxu0 0.0
  %308 = vmatprep.subr.mxu0 0.0
  %309 = vmatpush1.msra.mxu0 0.0
  %310 = vmatprep.subr.mxu0 0.0
  %311 = vmatpush1.msra.mxu0 0.0
  %312 = vmatprep.subr.mxu0 0.0
  %313 = vmatpush1.msra.mxu0 0.0
  %314 = vmatprep.subr.mxu0 0.0
  %315 = vmatpush1.msra.mxu0 0.0
  %316 = vmatprep.subr.mxu0 0.0
  %317 = vmatpush1.msra.mxu0 0.0
  %318 = vmatprep.subr.mxu0 0.0
  %319 = vmatpush1.msra.mxu0 0.0
  %320 = vmatprep.subr.mxu0 0.0
  %321 = vmatpush1.msra.mxu0 0.0
  %322 = vmatprep.subr.mxu0 0.0
  %323 = vmatpush1.msra.mxu0 0.0
  %324 = vmatprep.subr.mxu0 0.0
  %325 = vmatpush1.msra.mxu0 0.0
  %326 = vmatprep.subr.mxu0 0.0
  %327 = vmatpush1.msra.mxu0 0.0
  %328 = vmatprep.subr.mxu0 0.0
  %329 = vmatpush1.msra.mxu0 0.0
  %330 = vmatprep.subr.mxu0 0.0
  %331 = vmatpush1.msra.mxu0 0.0
  %332 = vmatprep.subr.mxu0 0.0
  %333 = vmatpush1.msra.mxu0 0.0
  %334 = vmatprep.subr.mxu0 0.0
  %335 = vmatpush1.msra.mxu0 0.0
  %336 = vmatprep.subr.mxu0 0.0
  %337 = vmatpush1.msra.mxu0 0.0
  %338 = vmatprep.subr.mxu0 0.0
  %339 = vmatpush1.msra.mxu0 0.0
  %340 = vmatprep.subr.mxu0 0.0
  %341 = vmatpush1.msra.mxu0 0.0
  %342 = vmatprep.subr.mxu0 0.0
  %343 = vmatpush1.msra.mxu0 0.0
  %344 = vmatprep.subr.mxu0 0.0
  %345 = vmatpush1.msra.mxu0 0.0
  %346 = vmatprep.subr.mxu0 0.0
  %347 = vmatpush1.msra.mxu0 0.0
  %348 = vmatprep.subr.mxu0 0.0
  %349 = vmatpush1.msra.mxu0 0.0
  %350 = vmatprep.subr.mxu0 0.0
  %351 = vmatpush1.msra.mxu0 0.0
  %352 = vmatprep.subr.mxu0 0.0
  %353 = vmatpush1.msra.mxu0 0.0
  %354 = vmatprep.subr.mxu0 0.0
  %355 = vmatpush1.msra.mxu0 0.0
  %356 = vmatprep.subr.mxu0 0.0
  %357 = vmatpush1.msra.mxu0 0.0
  %358 = vmatprep.subr.mxu0 0.0
  %359 = vmatpush1.msra.mxu0 0.0
  %360 = vmatprep.mubr.f32.mxu0 0.0
  %361 = vmatmul.mubr.f32.gmra.mrb[0].mxu0 %v294
  %v362 = vpop.f32.mrb[0].mxu0
  %v363 = vadd.f32 0.0, %v362
  %v364 = vpop.f32.mrb[0].mxu0
  %365 = vdwg.mxu0
  %v366 = vadd.f32 %v158, %v363
  %v367 = vxor.u32 %v366, 2147483648
  %v368 = vmul.f32 %v367, 1.442695
  %v369 = vpow.pop %v368
  %v370 = vadd.f32 %v369, 1.0
  %v371 = vrcp.pop %v370
  %v372 = vmul.f32 1.0, %v371
  %v373 = vtanh.pop %v366
  %v374 = vsel %vm36, %v373, %v372
  %v375 = vmul.f32 %v374, %v284
  %377 = vrot.lane.b32.xlu0 %v374, 64
  %v378 = vpop.permute.xlu0 %377
  %v380 = vmul.f32 %v374, %v378
  %382 = vrot.lane.b32.xlu0 %v380, 32
  %v383 = vpop.permute.xlu0 %382
  %v385 = vadd.f32 %v375, %v383
  %v386 = vtanh.pop %v385
  %388 = vrot.lane.b32.xlu0 %v386, 64
  %v389 = vpop.permute.xlu0 %388
  %v391 = vmul.f32 %v374, %v389
  %393 = vrot.lane.b32.xlu0 %v391, 32
  %v394 = vpop.permute.xlu0 %393
  %v395 = vsel %vm191, %v394, 0
  %397 = vmatprep.subr.mxu0 0.0
  %398 = vmatpush1.msra.mxu0 %v46
  %399 = vmatprep.subr.mxu0 0.0
  %400 = vmatpush1.msra.mxu0 %v47
  %401 = vmatprep.subr.mxu0 0.0
  %402 = vmatpush1.msra.mxu0 %v48
  %403 = vmatprep.subr.mxu0 0.0
  %404 = vmatpush1.msra.mxu0 %v49
  %405 = vmatprep.subr.mxu0 0.0
  %406 = vmatpush1.msra.mxu0 0.0
  %407 = vmatprep.subr.mxu0 0.0
  %408 = vmatpush1.msra.mxu0 0.0
  %409 = vmatprep.subr.mxu0 0.0
  %410 = vmatpush1.msra.mxu0 0.0
  %411 = vmatprep.subr.mxu0 0.0
  %412 = vmatpush1.msra.mxu0 0.0
  %413 = vmatprep.subr.mxu0 0.0
  %414 = vmatpush1.msra.mxu0 0.0
  %415 = vmatprep.subr.mxu0 0.0
  %416 = vmatpush1.msra.mxu0 0.0
  %417 = vmatprep.subr.mxu0 0.0
  %418 = vmatpush1.msra.mxu0 0.0
  %419 = vmatprep.subr.mxu0 0.0
  %420 = vmatpush1.msra.mxu0 0.0
  %421 = vmatprep.subr.mxu0 0.0
  %422 = vmatpush1.msra.mxu0 0.0
  %423 = vmatprep.subr.mxu0 0.0
  %424 = vmatpush1.msra.mxu0 0.0
  %425 = vmatprep.subr.mxu0 0.0
  %426 = vmatpush1.msra.mxu0 0.0
  %427 = vmatprep.subr.mxu0 0.0
  %428 = vmatpush1.msra.mxu0 0.0
  %429 = vmatprep.subr.mxu0 0.0
  %430 = vmatpush1.msra.mxu0 0.0
  %431 = vmatprep.subr.mxu0 0.0
  %432 = vmatpush1.msra.mxu0 0.0
  %433 = vmatprep.subr.mxu0 0.0
  %434 = vmatpush1.msra.mxu0 0.0
  %435 = vmatprep.subr.mxu0 0.0
  %436 = vmatpush1.msra.mxu0 0.0
  %437 = vmatprep.subr.mxu0 0.0
  %438 = vmatpush1.msra.mxu0 0.0
  %439 = vmatprep.subr.mxu0 0.0
  %440 = vmatpush1.msra.mxu0 0.0
  %441 = vmatprep.subr.mxu0 0.0
  %442 = vmatpush1.msra.mxu0 0.0
  %443 = vmatprep.subr.mxu0 0.0
  %444 = vmatpush1.msra.mxu0 0.0
  %445 = vmatprep.subr.mxu0 0.0
  %446 = vmatpush1.msra.mxu0 0.0
  %447 = vmatprep.subr.mxu0 0.0
  %448 = vmatpush1.msra.mxu0 0.0
  %449 = vmatprep.subr.mxu0 0.0
  %450 = vmatpush1.msra.mxu0 0.0
  %451 = vmatprep.subr.mxu0 0.0
  %452 = vmatpush1.msra.mxu0 0.0
  %453 = vmatprep.subr.mxu0 0.0
  %454 = vmatpush1.msra.mxu0 0.0
  %455 = vmatprep.subr.mxu0 0.0
  %456 = vmatpush1.msra.mxu0 0.0
  %457 = vmatprep.subr.mxu0 0.0
  %458 = vmatpush1.msra.mxu0 0.0
  %459 = vmatprep.subr.mxu0 0.0
  %460 = vmatpush1.msra.mxu0 0.0
  %461 = vmatprep.mubr.f32.mxu0 0.0
  %462 = vmatmul.mubr.f32.gmra.mrb[0].mxu0 %v395
  %v463 = vpop.f32.mrb[0].mxu0
  %v464 = vadd.f32 0.0, %v463
  %v465 = vpop.f32.mrb[0].mxu0
  %466 = vdwg.mxu0
  %v467 = vadd.f32 %v163, %v464
  %v468 = vxor.u32 %v467, 2147483648
  %v469 = vmul.f32 %v468, 1.442695
  %v470 = vpow.pop %v469
  %v471 = vadd.f32 %v470, 1.0
  %v472 = vrcp.pop %v471
  %v473 = vmul.f32 1.0, %v472
  %v474 = vtanh.pop %v467
  %v475 = vsel %vm36, %v474, %v473
  %v476 = vmul.f32 %v475, %v385
  %478 = vrot.lane.b32.xlu0 %v475, 64
  %v479 = vpop.permute.xlu0 %478
  %v481 = vmul.f32 %v475, %v479
  %483 = vrot.lane.b32.xlu0 %v481, 32
  %v484 = vpop.permute.xlu0 %483
  %v486 = vadd.f32 %v476, %v484
  %v487 = vtanh.pop %v486
  %489 = vrot.lane.b32.xlu0 %v487, 64
  %v490 = vpop.permute.xlu0 %489
  %v492 = vmul.f32 %v475, %v490
  %494 = vrot.lane.b32.xlu0 %v492, 32
  %v495 = vpop.permute.xlu0 %494
  %v496 = vsel %vm191, %v495, 0
  %498 = vmatprep.subr.mxu0 0.0
  %499 = vmatpush1.msra.mxu0 %v46
  %500 = vmatprep.subr.mxu0 0.0
  %501 = vmatpush1.msra.mxu0 %v47
  %502 = vmatprep.subr.mxu0 0.0
  %503 = vmatpush1.msra.mxu0 %v48
  %504 = vmatprep.subr.mxu0 0.0
  %505 = vmatpush1.msra.mxu0 %v49
  %506 = vmatprep.subr.mxu0 0.0
  %507 = vmatpush1.msra.mxu0 0.0
  %508 = vmatprep.subr.mxu0 0.0
  %509 = vmatpush1.msra.mxu0 0.0
  %510 = vmatprep.subr.mxu0 0.0
  %511 = vmatpush1.msra.mxu0 0.0
  %512 = vmatprep.subr.mxu0 0.0
  %513 = vmatpush1.msra.mxu0 0.0
  %514 = vmatprep.subr.mxu0 0.0
  %515 = vmatpush1.msra.mxu0 0.0
  %516 = vmatprep.subr.mxu0 0.0
  %517 = vmatpush1.msra.mxu0 0.0
  %518 = vmatprep.subr.mxu0 0.0
  %519 = vmatpush1.msra.mxu0 0.0
  %520 = vmatprep.subr.mxu0 0.0
  %521 = vmatpush1.msra.mxu0 0.0
  %522 = vmatprep.subr.mxu0 0.0
  %523 = vmatpush1.msra.mxu0 0.0
  %524 = vmatprep.subr.mxu0 0.0
  %525 = vmatpush1.msra.mxu0 0.0
  %526 = vmatprep.subr.mxu0 0.0
  %527 = vmatpush1.msra.mxu0 0.0
  %528 = vmatprep.subr.mxu0 0.0
  %529 = vmatpush1.msra.mxu0 0.0
  %530 = vmatprep.subr.mxu0 0.0
  %531 = vmatpush1.msra.mxu0 0.0
  %532 = vmatprep.subr.mxu0 0.0
  %533 = vmatpush1.msra.mxu0 0.0
  %534 = vmatprep.subr.mxu0 0.0
  %535 = vmatpush1.msra.mxu0 0.0
  %536 = vmatprep.subr.mxu0 0.0
  %537 = vmatpush1.msra.mxu0 0.0
  %538 = vmatprep.subr.mxu0 0.0
  %539 = vmatpush1.msra.mxu0 0.0
  %540 = vmatprep.subr.mxu0 0.0
  %541 = vmatpush1.msra.mxu0 0.0
  %542 = vmatprep.subr.mxu0 0.0
  %543 = vmatpush1.msra.mxu0 0.0
  %544 = vmatprep.subr.mxu0 0.0
  %545 = vmatpush1.msra.mxu0 0.0
  %546 = vmatprep.subr.mxu0 0.0
  %547 = vmatpush1.msra.mxu0 0.0
  %548 = vmatprep.subr.mxu0 0.0
  %549 = vmatpush1.msra.mxu0 0.0
  %550 = vmatprep.subr.mxu0 0.0
  %551 = vmatpush1.msra.mxu0 0.0
  %552 = vmatprep.subr.mxu0 0.0
  %553 = vmatpush1.msra.mxu0 0.0
  %554 = vmatprep.subr.mxu0 0.0
  %555 = vmatpush1.msra.mxu0 0.0
  %556 = vmatprep.subr.mxu0 0.0
  %557 = vmatpush1.msra.mxu0 0.0
  %558 = vmatprep.subr.mxu0 0.0
  %559 = vmatpush1.msra.mxu0 0.0
  %560 = vmatprep.subr.mxu0 0.0
  %561 = vmatpush1.msra.mxu0 0.0
  %562 = vmatprep.mubr.f32.mxu0 0.0
  %563 = vmatmul.mubr.f32.gmra.mrb[0].mxu0 %v496
  %v564 = vpop.f32.mrb[0].mxu0
  %v565 = vadd.f32 0.0, %v564
  %v566 = vpop.f32.mrb[0].mxu0
  %567 = vdwg.mxu0
  %v568 = vadd.f32 %v168, %v565
  %v569 = vxor.u32 %v568, 2147483648
  %v570 = vmul.f32 %v569, 1.442695
  %v571 = vpow.pop %v570
  %v572 = vadd.f32 %v571, 1.0
  %v573 = vrcp.pop %v572
  %v574 = vmul.f32 1.0, %v573
  %v575 = vtanh.pop %v568
  %v576 = vsel %vm36, %v575, %v574
  %v577 = vmul.f32 %v576, %v486
  %579 = vrot.lane.b32.xlu0 %v576, 64
  %v580 = vpop.permute.xlu0 %579
  %v582 = vmul.f32 %v576, %v580
  %584 = vrot.lane.b32.xlu0 %v582, 32
  %v585 = vpop.permute.xlu0 %584
  %v587 = vadd.f32 %v577, %v585
  %v588 = vtanh.pop %v587
  %590 = vrot.lane.b32.xlu0 %v588, 64
  %v591 = vpop.permute.xlu0 %590
  %v593 = vmul.f32 %v576, %v591
  %595 = vrot.lane.b32.xlu0 %v593, 32
  %v596 = vpop.permute.xlu0 %595
  %v597 = vsel %vm191, %v596, 0
  %599 = vmatprep.subr.mxu0 0.0
  %600 = vmatpush1.msra.mxu0 %v46
  %601 = vmatprep.subr.mxu0 0.0
  %602 = vmatpush1.msra.mxu0 %v47
  %603 = vmatprep.subr.mxu0 0.0
  %604 = vmatpush1.msra.mxu0 %v48
  %605 = vmatprep.subr.mxu0 0.0
  %606 = vmatpush1.msra.mxu0 %v49
  %607 = vmatprep.subr.mxu0 0.0
  %608 = vmatpush1.msra.mxu0 0.0
  %609 = vmatprep.subr.mxu0 0.0
  %610 = vmatpush1.msra.mxu0 0.0
  %611 = vmatprep.subr.mxu0 0.0
  %612 = vmatpush1.msra.mxu0 0.0
  %613 = vmatprep.subr.mxu0 0.0
  %614 = vmatpush1.msra.mxu0 0.0
  %615 = vmatprep.subr.mxu0 0.0
  %616 = vmatpush1.msra.mxu0 0.0
  %617 = vmatprep.subr.mxu0 0.0
  %618 = vmatpush1.msra.mxu0 0.0
  %619 = vmatprep.subr.mxu0 0.0
  %620 = vmatpush1.msra.mxu0 0.0
  %621 = vmatprep.subr.mxu0 0.0
  %622 = vmatpush1.msra.mxu0 0.0
  %623 = vmatprep.subr.mxu0 0.0
  %624 = vmatpush1.msra.mxu0 0.0
  %625 = vmatprep.subr.mxu0 0.0
  %626 = vmatpush1.msra.mxu0 0.0
  %627 = vmatprep.subr.mxu0 0.0
  %628 = vmatpush1.msra.mxu0 0.0
  %629 = vmatprep.subr.mxu0 0.0
  %630 = vmatpush1.msra.mxu0 0.0
  %631 = vmatprep.subr.mxu0 0.0
  %632 = vmatpush1.msra.mxu0 0.0
  %633 = vmatprep.subr.mxu0 0.0
  %634 = vmatpush1.msra.mxu0 0.0
  %635 = vmatprep.subr.mxu0 0.0
  %636 = vmatpush1.msra.mxu0 0.0
  %637 = vmatprep.subr.mxu0 0.0
  %638 = vmatpush1.msra.mxu0 0.0
  %639 = vmatprep.subr.mxu0 0.0
  %640 = vmatpush1.msra.mxu0 0.0
  %641 = vmatprep.subr.mxu0 0.0
  %642 = vmatpush1.msra.mxu0 0.0
  %643 = vmatprep.subr.mxu0 0.0
  %644 = vmatpush1.msra.mxu0 0.0
  %645 = vmatprep.subr.mxu0 0.0
  %646 = vmatpush1.msra.mxu0 0.0
  %647 = vmatprep.subr.mxu0 0.0
  %648 = vmatpush1.msra.mxu0 0.0
  %649 = vmatprep.subr.mxu0 0.0
  %650 = vmatpush1.msra.mxu0 0.0
  %651 = vmatprep.subr.mxu0 0.0
  %652 = vmatpush1.msra.mxu0 0.0
  %653 = vmatprep.subr.mxu0 0.0
  %654 = vmatpush1.msra.mxu0 0.0
  %655 = vmatprep.subr.mxu0 0.0
  %656 = vmatpush1.msra.mxu0 0.0
  %657 = vmatprep.subr.mxu0 0.0
  %658 = vmatpush1.msra.mxu0 0.0
  %659 = vmatprep.subr.mxu0 0.0
  %660 = vmatpush1.msra.mxu0 0.0
  %661 = vmatprep.subr.mxu0 0.0
  %662 = vmatpush1.msra.mxu0 0.0
  %663 = vmatprep.mubr.f32.mxu0 0.0
  %664 = vmatmul.mubr.f32.gmra.mrb[0].mxu0 %v597
  %v665 = vpop.f32.mrb[0].mxu0
  %v666 = vadd.f32 0.0, %v665
  %v667 = vpop.f32.mrb[0].mxu0
  %668 = vdwg.mxu0
  %v669 = vadd.f32 %v173, %v666
  %v670 = vxor.u32 %v669, 2147483648
  %v671 = vmul.f32 %v670, 1.442695
  %v672 = vpow.pop %v671
  %v673 = vadd.f32 %v672, 1.0
  %v674 = vrcp.pop %v673
  %v675 = vmul.f32 1.0, %v674
  %v676 = vtanh.pop %v669
  %v677 = vsel %vm36, %v676, %v675
  %v678 = vmul.f32 %v677, %v587
  %680 = vrot.lane.b32.xlu0 %v677, 64
  %v681 = vpop.permute.xlu0 %680
  %v683 = vmul.f32 %v677, %v681
  %685 = vrot.lane.b32.xlu0 %v683, 32
  %v686 = vpop.permute.xlu0 %685
  %v688 = vadd.f32 %v678, %v686
  %v689 = vtanh.pop %v688
  %691 = vrot.lane.b32.xlu0 %v689, 64
  %v692 = vpop.permute.xlu0 %691
  %v694 = vmul.f32 %v677, %v692
  %696 = vrot.lane.b32.xlu0 %v694, 32
  %v697 = vpop.permute.xlu0 %696
  %v698 = vsel %vm191, %v697, 0
  %700 = vmatprep.subr.mxu0 0.0
  %701 = vmatpush1.msra.mxu0 %v46
  %702 = vmatprep.subr.mxu0 0.0
  %703 = vmatpush1.msra.mxu0 %v47
  %704 = vmatprep.subr.mxu0 0.0
  %705 = vmatpush1.msra.mxu0 %v48
  %706 = vmatprep.subr.mxu0 0.0
  %707 = vmatpush1.msra.mxu0 %v49
  %708 = vmatprep.subr.mxu0 0.0
  %709 = vmatpush1.msra.mxu0 0.0
  %710 = vmatprep.subr.mxu0 0.0
  %711 = vmatpush1.msra.mxu0 0.0
  %712 = vmatprep.subr.mxu0 0.0
  %713 = vmatpush1.msra.mxu0 0.0
  %714 = vmatprep.subr.mxu0 0.0
  %715 = vmatpush1.msra.mxu0 0.0
  %716 = vmatprep.subr.mxu0 0.0
  %717 = vmatpush1.msra.mxu0 0.0
  %718 = vmatprep.subr.mxu0 0.0
  %719 = vmatpush1.msra.mxu0 0.0
  %720 = vmatprep.subr.mxu0 0.0
  %721 = vmatpush1.msra.mxu0 0.0
  %722 = vmatprep.subr.mxu0 0.0
  %723 = vmatpush1.msra.mxu0 0.0
  %724 = vmatprep.subr.mxu0 0.0
  %725 = vmatpush1.msra.mxu0 0.0
  %726 = vmatprep.subr.mxu0 0.0
  %727 = vmatpush1.msra.mxu0 0.0
  %728 = vmatprep.subr.mxu0 0.0
  %729 = vmatpush1.msra.mxu0 0.0
  %730 = vmatprep.subr.mxu0 0.0
  %731 = vmatpush1.msra.mxu0 0.0
  %732 = vmatprep.subr.mxu0 0.0
  %733 = vmatpush1.msra.mxu0 0.0
  %734 = vmatprep.subr.mxu0 0.0
  %735 = vmatpush1.msra.mxu0 0.0
  %736 = vmatprep.subr.mxu0 0.0
  %737 = vmatpush1.msra.mxu0 0.0
  %738 = vmatprep.subr.mxu0 0.0
  %739 = vmatpush1.msra.mxu0 0.0
  %740 = vmatprep.subr.mxu0 0.0
  %741 = vmatpush1.msra.mxu0 0.0
  %742 = vmatprep.subr.mxu0 0.0
  %743 = vmatpush1.msra.mxu0 0.0
  %744 = vmatprep.subr.mxu0 0.0
  %745 = vmatpush1.msra.mxu0 0.0
  %746 = vmatprep.subr.mxu0 0.0
  %747 = vmatpush1.msra.mxu0 0.0
  %748 = vmatprep.subr.mxu0 0.0
  %749 = vmatpush1.msra.mxu0 0.0
  %750 = vmatprep.subr.mxu0 0.0
  %751 = vmatpush1.msra.mxu0 0.0
  %752 = vmatprep.subr.mxu0 0.0
  %753 = vmatpush1.msra.mxu0 0.0
  %754 = vmatprep.subr.mxu0 0.0
  %755 = vmatpush1.msra.mxu0 0.0
  %756 = vmatprep.subr.mxu0 0.0
  %757 = vmatpush1.msra.mxu0 0.0
  %758 = vmatprep.subr.mxu0 0.0
  %759 = vmatpush1.msra.mxu0 0.0
  %760 = vmatprep.subr.mxu0 0.0
  %761 = vmatpush1.msra.mxu0 0.0
  %762 = vmatprep.subr.mxu0 0.0
  %763 = vmatpush1.msra.mxu0 0.0
  %764 = vmatprep.mubr.f32.mxu0 0.0
  %765 = vmatmul.mubr.f32.gmra.mrb[0].mxu0 %v698
  %v766 = vpop.f32.mrb[0].mxu0
  %v767 = vadd.f32 0.0, %v766
  %v768 = vpop.f32.mrb[0].mxu0
  %769 = vdwg.mxu0
  %v770 = vadd.f32 %v178, %v767
  %v771 = vxor.u32 %v770, 2147483648
  %v772 = vmul.f32 %v771, 1.442695
  %v773 = vpow.pop %v772
  %v774 = vadd.f32 %v773, 1.0
  %v775 = vrcp.pop %v774
  %v776 = vmul.f32 1.0, %v775
  %v777 = vtanh.pop %v770
  %v778 = vsel %vm36, %v777, %v776
  %v779 = vmul.f32 %v778, %v688
  %781 = vrot.lane.b32.xlu0 %v778, 64
  %v782 = vpop.permute.xlu0 %781
  %v784 = vmul.f32 %v778, %v782
  %786 = vrot.lane.b32.xlu0 %v784, 32
  %v787 = vpop.permute.xlu0 %786
  %v789 = vadd.f32 %v779, %v787
  %v790 = vtanh.pop %v789
  %792 = vrot.lane.b32.xlu0 %v790, 64
  %v793 = vpop.permute.xlu0 %792
  %v795 = vmul.f32 %v778, %v793
  %797 = vrot.lane.b32.xlu0 %v795, 32
  %v798 = vpop.permute.xlu0 %797
  %v799 = vsel %vm191, %v798, 0
  %801 = vmatprep.subr.mxu0 0.0
  %802 = vmatpush1.msra.mxu0 %v46
  %803 = vmatprep.subr.mxu0 0.0
  %804 = vmatpush1.msra.mxu0 %v47
  %805 = vmatprep.subr.mxu0 0.0
  %806 = vmatpush1.msra.mxu0 %v48
  %807 = vmatprep.subr.mxu0 0.0
  %808 = vmatpush1.msra.mxu0 %v49
  %809 = vmatprep.subr.mxu0 0.0
  %810 = vmatpush1.msra.mxu0 0.0
  %811 = vmatprep.subr.mxu0 0.0
  %812 = vmatpush1.msra.mxu0 0.0
  %813 = vmatprep.subr.mxu0 0.0
  %814 = vmatpush1.msra.mxu0 0.0
  %815 = vmatprep.subr.mxu0 0.0
  %816 = vmatpush1.msra.mxu0 0.0
  %817 = vmatprep.subr.mxu0 0.0
  %818 = vmatpush1.msra.mxu0 0.0
  %819 = vmatprep.subr.mxu0 0.0
  %820 = vmatpush1.msra.mxu0 0.0
  %821 = vmatprep.subr.mxu0 0.0
  %822 = vmatpush1.msra.mxu0 0.0
  %823 = vmatprep.subr.mxu0 0.0
  %824 = vmatpush1.msra.mxu0 0.0
  %825 = vmatprep.subr.mxu0 0.0
  %826 = vmatpush1.msra.mxu0 0.0
  %827 = vmatprep.subr.mxu0 0.0
  %828 = vmatpush1.msra.mxu0 0.0
  %829 = vmatprep.subr.mxu0 0.0
  %830 = vmatpush1.msra.mxu0 0.0
  %831 = vmatprep.subr.mxu0 0.0
  %832 = vmatpush1.msra.mxu0 0.0
  %833 = vmatprep.subr.mxu0 0.0
  %834 = vmatpush1.msra.mxu0 0.0
  %835 = vmatprep.subr.mxu0 0.0
  %836 = vmatpush1.msra.mxu0 0.0
  %837 = vmatprep.subr.mxu0 0.0
  %838 = vmatpush1.msra.mxu0 0.0
  %839 = vmatprep.subr.mxu0 0.0
  %840 = vmatpush1.msra.mxu0 0.0
  %841 = vmatprep.subr.mxu0 0.0
  %842 = vmatpush1.msra.mxu0 0.0
  %843 = vmatprep.subr.mxu0 0.0
  %844 = vmatpush1.msra.mxu0 0.0
  %845 = vmatprep.subr.mxu0 0.0
  %846 = vmatpush1.msra.mxu0 0.0
  %847 = vmatprep.subr.mxu0 0.0
  %848 = vmatpush1.msra.mxu0 0.0
  %849 = vmatprep.subr.mxu0 0.0
  %850 = vmatpush1.msra.mxu0 0.0
  %851 = vmatprep.subr.mxu0 0.0
  %852 = vmatpush1.msra.mxu0 0.0
  %853 = vmatprep.subr.mxu0 0.0
  %854 = vmatpush1.msra.mxu0 0.0
  %855 = vmatprep.subr.mxu0 0.0
  %856 = vmatpush1.msra.mxu0 0.0
  %857 = vmatprep.subr.mxu0 0.0
  %858 = vmatpush1.msra.mxu0 0.0
  %859 = vmatprep.subr.mxu0 0.0
  %860 = vmatpush1.msra.mxu0 0.0
  %861 = vmatprep.subr.mxu0 0.0
  %862 = vmatpush1.msra.mxu0 0.0
  %863 = vmatprep.subr.mxu0 0.0
  %864 = vmatpush1.msra.mxu0 0.0
  %865 = vmatprep.mubr.f32.mxu0 0.0
  %866 = vmatmul.mubr.f32.gmra.mrb[0].mxu0 %v799
  %v867 = vpop.f32.mrb[0].mxu0
  %v868 = vadd.f32 0.0, %v867
  %v869 = vpop.f32.mrb[0].mxu0
  %870 = vdwg.mxu0
  %v871 = vadd.f32 %v183, %v868
  %v872 = vxor.u32 %v871, 2147483648
  %v873 = vmul.f32 %v872, 1.442695
  %v874 = vpow.pop %v873
  %v875 = vadd.f32 %v874, 1.0
  %v876 = vrcp.pop %v875
  %v877 = vmul.f32 1.0, %v876
  %v878 = vtanh.pop %v871
  %v879 = vsel %vm36, %v878, %v877
  %v880 = vmul.f32 %v879, %v789
  %882 = vrot.lane.b32.xlu0 %v879, 64
  %v883 = vpop.permute.xlu0 %882
  %v885 = vmul.f32 %v879, %v883
  %887 = vrot.lane.b32.xlu0 %v885, 32
  %v888 = vpop.permute.xlu0 %887
  %v890 = vadd.f32 %v880, %v888
  %v891 = vtanh.pop %v890
  %893 = vrot.lane.b32.xlu0 %v891, 64
  %v894 = vpop.permute.xlu0 %893
  %v896 = vmul.f32 %v879, %v894
  %898 = vrot.lane.b32.xlu0 %v896, 32
  %v899 = vpop.permute.xlu0 %898
  %v900 = vsel %vm191, %v899, 0
  %902 = vmatprep.subr.mxu0 0.0
  %903 = vmatpush1.msra.mxu0 %v46
  %904 = vmatprep.subr.mxu0 0.0
  %905 = vmatpush1.msra.mxu0 %v47
  %906 = vmatprep.subr.mxu0 0.0
  %907 = vmatpush1.msra.mxu0 %v48
  %908 = vmatprep.subr.mxu0 0.0
  %909 = vmatpush1.msra.mxu0 %v49
  %910 = vmatprep.subr.mxu0 0.0
  %911 = vmatpush1.msra.mxu0 0.0
  %912 = vmatprep.subr.mxu0 0.0
  %913 = vmatpush1.msra.mxu0 0.0
  %914 = vmatprep.subr.mxu0 0.0
  %915 = vmatpush1.msra.mxu0 0.0
  %916 = vmatprep.subr.mxu0 0.0
  %917 = vmatpush1.msra.mxu0 0.0
  %918 = vmatprep.subr.mxu0 0.0
  %919 = vmatpush1.msra.mxu0 0.0
  %920 = vmatprep.subr.mxu0 0.0
  %921 = vmatpush1.msra.mxu0 0.0
  %922 = vmatprep.subr.mxu0 0.0
  %923 = vmatpush1.msra.mxu0 0.0
  %924 = vmatprep.subr.mxu0 0.0
  %925 = vmatpush1.msra.mxu0 0.0
  %926 = vmatprep.subr.mxu0 0.0
  %927 = vmatpush1.msra.mxu0 0.0
  %928 = vmatprep.subr.mxu0 0.0
  %929 = vmatpush1.msra.mxu0 0.0
  %930 = vmatprep.subr.mxu0 0.0
  %931 = vmatpush1.msra.mxu0 0.0
  %932 = vmatprep.subr.mxu0 0.0
  %933 = vmatpush1.msra.mxu0 0.0
  %934 = vmatprep.subr.mxu0 0.0
  %935 = vmatpush1.msra.mxu0 0.0
  %936 = vmatprep.subr.mxu0 0.0
  %937 = vmatpush1.msra.mxu0 0.0
  %938 = vmatprep.subr.mxu0 0.0
  %939 = vmatpush1.msra.mxu0 0.0
  %940 = vmatprep.subr.mxu0 0.0
  %941 = vmatpush1.msra.mxu0 0.0
  %942 = vmatprep.subr.mxu0 0.0
  %943 = vmatpush1.msra.mxu0 0.0
  %944 = vmatprep.subr.mxu0 0.0
  %945 = vmatpush1.msra.mxu0 0.0
  %946 = vmatprep.subr.mxu0 0.0
  %947 = vmatpush1.msra.mxu0 0.0
  %948 = vmatprep.subr.mxu0 0.0
  %949 = vmatpush1.msra.mxu0 0.0
  %950 = vmatprep.subr.mxu0 0.0
  %951 = vmatpush1.msra.mxu0 0.0
  %952 = vmatprep.subr.mxu0 0.0
  %953 = vmatpush1.msra.mxu0 0.0
  %954 = vmatprep.subr.mxu0 0.0
  %955 = vmatpush1.msra.mxu0 0.0
  %956 = vmatprep.subr.mxu0 0.0
  %957 = vmatpush1.msra.mxu0 0.0
  %958 = vmatprep.subr.mxu0 0.0
  %959 = vmatpush1.msra.mxu0 0.0
  %960 = vmatprep.subr.mxu0 0.0
  %961 = vmatpush1.msra.mxu0 0.0
  %962 = vmatprep.subr.mxu0 0.0
  %963 = vmatpush1.msra.mxu0 0.0
  %964 = vmatprep.subr.mxu0 0.0
  %965 = vmatpush1.msra.mxu0 0.0
  %966 = vmatprep.mubr.f32.mxu0 0.0
  %967 = vmatmul.mubr.f32.gmra.mrb[0].mxu0 %v900
  %v968 = vpop.f32.mrb[0].mxu0
  %v969 = vadd.f32 0.0, %v968
  %v970 = vpop.f32.mrb[0].mxu0
  %971 = vdwg.mxu0
  %v972 = vadd.f32 %v188, %v969
  %v973 = vxor.u32 %v972, 2147483648
  %v974 = vmul.f32 %v973, 1.442695
  %v975 = vpow.pop %v974
  %v976 = vadd.f32 %v975, 1.0
  %v977 = vrcp.pop %v976
  %v978 = vmul.f32 1.0, %v977
  %v979 = vtanh.pop %v972
  %v980 = vsel %vm36, %v979, %v978
  %v981 = vmul.f32 %v980, %v890
  %983 = vrot.lane.b32.xlu0 %v980, 64
  %v984 = vpop.permute.xlu0 %983
  %v986 = vmul.f32 %v980, %v984
  %988 = vrot.lane.b32.xlu0 %v986, 32
  %v989 = vpop.permute.xlu0 %988
  %v991 = vadd.f32 %v981, %v989
  %v992 = vtanh.pop %v991
  %994 = vrot.lane.b32.xlu0 %v992, 64
  %v995 = vpop.permute.xlu0 %994
  %v997 = vmul.f32 %v980, %v995
  %v998 = vld [vmem:[%s4] sm:$0xff]
  %v999 = vld [vmem:[%s4 + $0x8] sm:$0xff]
  %v1000 = vld [vmem:[%s4 + $0x10] sm:$0xff]
  %v1001 = vld [vmem:[%s4 + $0x18] sm:$0xff]
  %v1002 = vld [vmem:[%s5] sm:$0xff]
  %v1003 = vld [vmem:[%s5 + $0x8] sm:$0xff]
  %v1004 = vld [vmem:[%s5 + $0x10] sm:$0xff]
  %v1005 = vld [vmem:[%s5 + $0x18] sm:$0xff]
  %v1006 = vld [vmem:[%s6] sm:$0x1]
  %v1008 = vlaneseq
  %v1009 = vshrl.u32 %v1008, 7
  %v1010 = vsub.s32 0, %v1009
  %v1011 = vrot.slane %v1006, %v1010
  %1014 = vrot.lane.b32.xlu0 %v997, 32
  %v1015 = vpop.permute.xlu0 %1014
  %v1016 = vsel %vm191, %v1015, 0
  %1018 = vmatprep.subr.mxu0 0.0
  %1019 = vmatpush1.msra.mxu0 %v998
  %1020 = vmatprep.subr.mxu0 0.0
  %1021 = vmatpush1.msra.mxu0 %v999
  %1022 = vmatprep.subr.mxu0 0.0
  %1023 = vmatpush1.msra.mxu0 %v1000
  %1024 = vmatprep.subr.mxu0 0.0
  %1025 = vmatpush1.msra.mxu0 %v1001
  %1026 = vmatprep.subr.mxu0 0.0
  %1027 = vmatpush1.msra.mxu0 0.0
  %1028 = vmatprep.subr.mxu0 0.0
  %1029 = vmatpush1.msra.mxu0 0.0
  %1030 = vmatprep.subr.mxu0 0.0
  %1031 = vmatpush1.msra.mxu0 0.0
  %1032 = vmatprep.subr.mxu0 0.0
  %1033 = vmatpush1.msra.mxu0 0.0
  %1034 = vmatprep.subr.mxu0 0.0
  %1035 = vmatpush1.msra.mxu0 0.0
  %1036 = vmatprep.subr.mxu0 0.0
  %1037 = vmatpush1.msra.mxu0 0.0
  %1038 = vmatprep.subr.mxu0 0.0
  %1039 = vmatpush1.msra.mxu0 0.0
  %1040 = vmatprep.subr.mxu0 0.0
  %1041 = vmatpush1.msra.mxu0 0.0
  %1042 = vmatprep.subr.mxu0 0.0
  %1043 = vmatpush1.msra.mxu0 0.0
  %1044 = vmatprep.subr.mxu0 0.0
  %1045 = vmatpush1.msra.mxu0 0.0
  %1046 = vmatprep.subr.mxu0 0.0
  %1047 = vmatpush1.msra.mxu0 0.0
  %1048 = vmatprep.subr.mxu0 0.0
  %1049 = vmatpush1.msra.mxu0 0.0
  %1050 = vmatprep.subr.mxu0 0.0
  %1051 = vmatpush1.msra.mxu0 0.0
  %1052 = vmatprep.subr.mxu0 0.0
  %1053 = vmatpush1.msra.mxu0 0.0
  %1054 = vmatprep.subr.mxu0 0.0
  %1055 = vmatpush1.msra.mxu0 0.0
  %1056 = vmatprep.subr.mxu0 0.0
  %1057 = vmatpush1.msra.mxu0 0.0
  %1058 = vmatprep.subr.mxu0 0.0
  %1059 = vmatpush1.msra.mxu0 0.0
  %1060 = vmatprep.subr.mxu0 0.0
  %1061 = vmatpush1.msra.mxu0 0.0
  %1062 = vmatprep.subr.mxu0 0.0
  %1063 = vmatpush1.msra.mxu0 0.0
  %1064 = vmatprep.subr.mxu0 0.0
  %1065 = vmatpush1.msra.mxu0 0.0
  %1066 = vmatprep.subr.mxu0 0.0
  %1067 = vmatpush1.msra.mxu0 0.0
  %1068 = vmatprep.subr.mxu0 0.0
  %1069 = vmatpush1.msra.mxu0 0.0
  %1070 = vmatprep.subr.mxu0 0.0
  %1071 = vmatpush1.msra.mxu0 0.0
  %1072 = vmatprep.subr.mxu0 0.0
  %1073 = vmatpush1.msra.mxu0 0.0
  %1074 = vmatprep.subr.mxu0 0.0
  %1075 = vmatpush1.msra.mxu0 0.0
  %1076 = vmatprep.subr.mxu0 0.0
  %1077 = vmatpush1.msra.mxu0 0.0
  %1078 = vmatprep.subr.mxu0 0.0
  %1079 = vmatpush1.msra.mxu0 0.0
  %1080 = vmatprep.subr.mxu0 0.0
  %1081 = vmatpush1.msra.mxu0 0.0
  %1082 = vmatprep.mubr.f32.mxu0 0.0
  %1083 = vmatmul.mubr.f32.gmra.mrb[0].mxu0 %v294
  %v1084 = vpop.f32.mrb[0].mxu0
  %v1085 = vadd.f32 %v1011, %v1084
  %v1086 = vpop.f32.mrb[0].mxu0
  %1087 = vmatprep.mubr.f32.mxu0 0.0
  %1088 = vmatmul.mubr.f32.gmra.mrb[0].mxu0 %v395
  %v1089 = vpop.f32.mrb[0].mxu0
  %v1090 = vadd.f32 %v1011, %v1089
  %v1091 = vpop.f32.mrb[0].mxu0
  %1092 = vmatprep.mubr.f32.mxu0 0.0
  %1093 = vmatmul.mubr.f32.gmra.mrb[0].mxu0 %v496
  %v1094 = vpop.f32.mrb[0].mxu0
  %v1095 = vadd.f32 %v1011, %v1094
  %v1096 = vpop.f32.mrb[0].mxu0
  %1097 = vmatprep.mubr.f32.mxu0 0.0
  %1098 = vmatmul.mubr.f32.gmra.mrb[0].mxu0 %v597
  %v1099 = vpop.f32.mrb[0].mxu0
  %v1100 = vadd.f32 %v1011, %v1099
  %v1101 = vpop.f32.mrb[0].mxu0
  %1102 = vmatprep.mubr.f32.mxu0 0.0
  %1103 = vmatmul.mubr.f32.gmra.mrb[0].mxu0 %v698
  %v1104 = vpop.f32.mrb[0].mxu0
  %v1105 = vadd.f32 %v1011, %v1104
  %v1106 = vpop.f32.mrb[0].mxu0
  %1107 = vmatprep.mubr.f32.mxu0 0.0
  %1108 = vmatmul.mubr.f32.gmra.mrb[0].mxu0 %v799
  %v1109 = vpop.f32.mrb[0].mxu0
  %v1110 = vadd.f32 %v1011, %v1109
  %v1111 = vpop.f32.mrb[0].mxu0
  %1112 = vmatprep.mubr.f32.mxu0 0.0
  %1113 = vmatmul.mubr.f32.gmra.mrb[0].mxu0 %v900
  %v1114 = vpop.f32.mrb[0].mxu0
  %v1115 = vadd.f32 %v1011, %v1114
  %v1116 = vpop.f32.mrb[0].mxu0
  %1117 = vmatprep.mubr.f32.mxu0 0.0
  %1118 = vmatmul.mubr.f32.gmra.mrb[0].mxu0 %v1016
  %v1119 = vpop.f32.mrb[0].mxu0
  %v1120 = vadd.f32 %v1011, %v1119
  %v1121 = vpop.f32.mrb[0].mxu0
  %1122 = vdwg.mxu0
  %1123 = vmatprep.subr.mxu0 0.0
  %1124 = vmatpush1.msra.mxu0 %v1002
  %1125 = vmatprep.subr.mxu0 0.0
  %1126 = vmatpush1.msra.mxu0 %v1003
  %1127 = vmatprep.subr.mxu0 0.0
  %1128 = vmatpush1.msra.mxu0 %v1004
  %1129 = vmatprep.subr.mxu0 0.0
  %1130 = vmatpush1.msra.mxu0 %v1005
  %1131 = vmatprep.subr.mxu0 0.0
  %1132 = vmatpush1.msra.mxu0 0.0
  %1133 = vmatprep.subr.mxu0 0.0
  %1134 = vmatpush1.msra.mxu0 0.0
  %1135 = vmatprep.subr.mxu0 0.0
  %1136 = vmatpush1.msra.mxu0 0.0
  %1137 = vmatprep.subr.mxu0 0.0
  %1138 = vmatpush1.msra.mxu0 0.0
  %1139 = vmatprep.subr.mxu0 0.0
  %1140 = vmatpush1.msra.mxu0 0.0
  %1141 = vmatprep.subr.mxu0 0.0
  %1142 = vmatpush1.msra.mxu0 0.0
  %1143 = vmatprep.subr.mxu0 0.0
  %1144 = vmatpush1.msra.mxu0 0.0
  %1145 = vmatprep.subr.mxu0 0.0
  %1146 = vmatpush1.msra.mxu0 0.0
  %1147 = vmatprep.subr.mxu0 0.0
  %1148 = vmatpush1.msra.mxu0 0.0
  %1149 = vmatprep.subr.mxu0 0.0
  %1150 = vmatpush1.msra.mxu0 0.0
  %1151 = vmatprep.subr.mxu0 0.0
  %1152 = vmatpush1.msra.mxu0 0.0
  %1153 = vmatprep.subr.mxu0 0.0
  %1154 = vmatpush1.msra.mxu0 0.0
  %1155 = vmatprep.subr.mxu0 0.0
  %1156 = vmatpush1.msra.mxu0 0.0
  %1157 = vmatprep.subr.mxu0 0.0
  %1158 = vmatpush1.msra.mxu0 0.0
  %1159 = vmatprep.subr.mxu0 0.0
  %1160 = vmatpush1.msra.mxu0 0.0
  %1161 = vmatprep.subr.mxu0 0.0
  %1162 = vmatpush1.msra.mxu0 0.0
  %1163 = vmatprep.subr.mxu0 0.0
  %1164 = vmatpush1.msra.mxu0 0.0
  %1165 = vmatprep.subr.mxu0 0.0
  %1166 = vmatpush1.msra.mxu0 0.0
  %1167 = vmatprep.subr.mxu0 0.0
  %1168 = vmatpush1.msra.mxu0 0.0
  %1169 = vmatprep.subr.mxu0 0.0
  %1170 = vmatpush1.msra.mxu0 0.0
  %1171 = vmatprep.subr.mxu0 0.0
  %1172 = vmatpush1.msra.mxu0 0.0
  %1173 = vmatprep.subr.mxu0 0.0
  %1174 = vmatpush1.msra.mxu0 0.0
  %1175 = vmatprep.subr.mxu0 0.0
  %1176 = vmatpush1.msra.mxu0 0.0
  %1177 = vmatprep.subr.mxu0 0.0
  %1178 = vmatpush1.msra.mxu0 0.0
  %1179 = vmatprep.subr.mxu0 0.0
  %1180 = vmatpush1.msra.mxu0 0.0
  %1181 = vmatprep.subr.mxu0 0.0
  %1182 = vmatpush1.msra.mxu0 0.0
  %1183 = vmatprep.subr.mxu0 0.0
  %1184 = vmatpush1.msra.mxu0 0.0
  %1185 = vmatprep.subr.mxu0 0.0
  %1186 = vmatpush1.msra.mxu0 0.0
  %1187 = vmatprep.mubr.f32.mxu0 0.0
  %1188 = vmatmul.mubr.f32.gmra.mrb[0].mxu0 %v193
  %v1189 = vpop.f32.mrb[0].mxu0
  %v1190 = vadd.f32 0.0, %v1189
  %v1191 = vpop.f32.mrb[0].mxu0
  %1192 = vdwg.mxu0
  %v1193 = vadd.f32 %v1085, %v1190
  %v1194 = vxor.u32 %v1193, 2147483648
  %v1195 = vmul.f32 %v1194, 1.442695
  %v1196 = vpow.pop %v1195
  %v1197 = vadd.f32 %v1196, 1.0
  %v1198 = vrcp.pop %v1197
  %v1199 = vmul.f32 1.0, %v1198
  %v1200 = vtanh.pop %v1193
  %v1201 = vsel %vm36, %v1200, %v1199
  %v1202 = vmul.f32 %v1201, 0.0
  %1204 = vrot.lane.b32.xlu0 %v1201, 64
  %v1205 = vpop.permute.xlu0 %1204
  %v1207 = vmul.f32 %v1201, %v1205
  %1209 = vrot.lane.b32.xlu0 %v1207, 32
  %v1210 = vpop.permute.xlu0 %1209
  %v1212 = vadd.f32 %v1202, %v1210
  %v1213 = vtanh.pop %v1212
  %1215 = vrot.lane.b32.xlu0 %v1213, 64
  %v1216 = vpop.permute.xlu0 %1215
  %v1218 = vmul.f32 %v1201, %v1216
  %1220 = vrot.lane.b32.xlu0 %v1218, 32
  %v1221 = vpop.permute.xlu0 %1220
  %v1222 = vsel %vm191, %v1221, 0
  %1224 = vmatprep.subr.mxu0 0.0
  %1225 = vmatpush1.msra.mxu0 %v1002
  %1226 = vmatprep.subr.mxu0 0.0
  %1227 = vmatpush1.msra.mxu0 %v1003
  %1228 = vmatprep.subr.mxu0 0.0
  %1229 = vmatpush1.msra.mxu0 %v1004
  %1230 = vmatprep.subr.mxu0 0.0
  %1231 = vmatpush1.msra.mxu0 %v1005
  %1232 = vmatprep.subr.mxu0 0.0
  %1233 = vmatpush1.msra.mxu0 0.0
  %1234 = vmatprep.subr.mxu0 0.0
  %1235 = vmatpush1.msra.mxu0 0.0
  %1236 = vmatprep.subr.mxu0 0.0
  %1237 = vmatpush1.msra.mxu0 0.0
  %1238 = vmatprep.subr.mxu0 0.0
  %1239 = vmatpush1.msra.mxu0 0.0
  %1240 = vmatprep.subr.mxu0 0.0
  %1241 = vmatpush1.msra.mxu0 0.0
  %1242 = vmatprep.subr.mxu0 0.0
  %1243 = vmatpush1.msra.mxu0 0.0
  %1244 = vmatprep.subr.mxu0 0.0
  %1245 = vmatpush1.msra.mxu0 0.0
  %1246 = vmatprep.subr.mxu0 0.0
  %1247 = vmatpush1.msra.mxu0 0.0
  %1248 = vmatprep.subr.mxu0 0.0
  %1249 = vmatpush1.msra.mxu0 0.0
  %1250 = vmatprep.subr.mxu0 0.0
  %1251 = vmatpush1.msra.mxu0 0.0
  %1252 = vmatprep.subr.mxu0 0.0
  %1253 = vmatpush1.msra.mxu0 0.0
  %1254 = vmatprep.subr.mxu0 0.0
  %1255 = vmatpush1.msra.mxu0 0.0
  %1256 = vmatprep.subr.mxu0 0.0
  %1257 = vmatpush1.msra.mxu0 0.0
  %1258 = vmatprep.subr.mxu0 0.0
  %1259 = vmatpush1.msra.mxu0 0.0
  %1260 = vmatprep.subr.mxu0 0.0
  %1261 = vmatpush1.msra.mxu0 0.0
  %1262 = vmatprep.subr.mxu0 0.0
  %1263 = vmatpush1.msra.mxu0 0.0
  %1264 = vmatprep.subr.mxu0 0.0
  %1265 = vmatpush1.msra.mxu0 0.0
  %1266 = vmatprep.subr.mxu0 0.0
  %1267 = vmatpush1.msra.mxu0 0.0
  %1268 = vmatprep.subr.mxu0 0.0
  %1269 = vmatpush1.msra.mxu0 0.0
  %1270 = vmatprep.subr.mxu0 0.0
  %1271 = vmatpush1.msra.mxu0 0.0
  %1272 = vmatprep.subr.mxu0 0.0
  %1273 = vmatpush1.msra.mxu0 0.0
  %1274 = vmatprep.subr.mxu0 0.0
  %1275 = vmatpush1.msra.mxu0 0.0
  %1276 = vmatprep.subr.mxu0 0.0
  %1277 = vmatpush1.msra.mxu0 0.0
  %1278 = vmatprep.subr.mxu0 0.0
  %1279 = vmatpush1.msra.mxu0 0.0
  %1280 = vmatprep.subr.mxu0 0.0
  %1281 = vmatpush1.msra.mxu0 0.0
  %1282 = vmatprep.subr.mxu0 0.0
  %1283 = vmatpush1.msra.mxu0 0.0
  %1284 = vmatprep.subr.mxu0 0.0
  %1285 = vmatpush1.msra.mxu0 0.0
  %1286 = vmatprep.subr.mxu0 0.0
  %1287 = vmatpush1.msra.mxu0 0.0
  %1288 = vmatprep.mubr.f32.mxu0 0.0
  %1289 = vmatmul.mubr.f32.gmra.mrb[0].mxu0 %v1222
  %v1290 = vpop.f32.mrb[0].mxu0
  %v1291 = vadd.f32 0.0, %v1290
  %v1292 = vpop.f32.mrb[0].mxu0
  %1293 = vdwg.mxu0
  %v1294 = vadd.f32 %v1090, %v1291
  %v1295 = vxor.u32 %v1294, 2147483648
  %v1296 = vmul.f32 %v1295, 1.442695
  %v1297 = vpow.pop %v1296
  %v1298 = vadd.f32 %v1297, 1.0
  %v1299 = vrcp.pop %v1298
  %v1300 = vmul.f32 1.0, %v1299
  %v1301 = vtanh.pop %v1294
  %v1302 = vsel %vm36, %v1301, %v1300
  %v1303 = vmul.f32 %v1302, %v1212
  %1305 = vrot.lane.b32.xlu0 %v1302, 64
  %v1306 = vpop.permute.xlu0 %1305
  %v1308 = vmul.f32 %v1302, %v1306
  %1310 = vrot.lane.b32.xlu0 %v1308, 32
  %v1311 = vpop.permute.xlu0 %1310
  %v1313 = vadd.f32 %v1303, %v1311
  %v1314 = vtanh.pop %v1313
  %1316 = vrot.lane.b32.xlu0 %v1314, 64
  %v1317 = vpop.permute.xlu0 %1316
  %v1319 = vmul.f32 %v1302, %v1317
  %1321 = vrot.lane.b32.xlu0 %v1319, 32
  %v1322 = vpop.permute.xlu0 %1321
  %v1323 = vsel %vm191, %v1322, 0
  %1325 = vmatprep.subr.mxu0 0.0
  %1326 = vmatpush1.msra.mxu0 %v1002
  %1327 = vmatprep.subr.mxu0 0.0
  %1328 = vmatpush1.msra.mxu0 %v1003
  %1329 = vmatprep.subr.mxu0 0.0
  %1330 = vmatpush1.msra.mxu0 %v1004
  %1331 = vmatprep.subr.mxu0 0.0
  %1332 = vmatpush1.msra.mxu0 %v1005
  %1333 = vmatprep.subr.mxu0 0.0
  %1334 = vmatpush1.msra.mxu0 0.0
  %1335 = vmatprep.subr.mxu0 0.0
  %1336 = vmatpush1.msra.mxu0 0.0
  %1337 = vmatprep.subr.mxu0 0.0
  %1338 = vmatpush1.msra.mxu0 0.0
  %1339 = vmatprep.subr.mxu0 0.0
  %1340 = vmatpush1.msra.mxu0 0.0
  %1341 = vmatprep.subr.mxu0 0.0
  %1342 = vmatpush1.msra.mxu0 0.0
  %1343 = vmatprep.subr.mxu0 0.0
  %1344 = vmatpush1.msra.mxu0 0.0
  %1345 = vmatprep.subr.mxu0 0.0
  %1346 = vmatpush1.msra.mxu0 0.0
  %1347 = vmatprep.subr.mxu0 0.0
  %1348 = vmatpush1.msra.mxu0 0.0
  %1349 = vmatprep.subr.mxu0 0.0
  %1350 = vmatpush1.msra.mxu0 0.0
  %1351 = vmatprep.subr.mxu0 0.0
  %1352 = vmatpush1.msra.mxu0 0.0
  %1353 = vmatprep.subr.mxu0 0.0
  %1354 = vmatpush1.msra.mxu0 0.0
  %1355 = vmatprep.subr.mxu0 0.0
  %1356 = vmatpush1.msra.mxu0 0.0
  %1357 = vmatprep.subr.mxu0 0.0
  %1358 = vmatpush1.msra.mxu0 0.0
  %1359 = vmatprep.subr.mxu0 0.0
  %1360 = vmatpush1.msra.mxu0 0.0
  %1361 = vmatprep.subr.mxu0 0.0
  %1362 = vmatpush1.msra.mxu0 0.0
  %1363 = vmatprep.subr.mxu0 0.0
  %1364 = vmatpush1.msra.mxu0 0.0
  %1365 = vmatprep.subr.mxu0 0.0
  %1366 = vmatpush1.msra.mxu0 0.0
  %1367 = vmatprep.subr.mxu0 0.0
  %1368 = vmatpush1.msra.mxu0 0.0
  %1369 = vmatprep.subr.mxu0 0.0
  %1370 = vmatpush1.msra.mxu0 0.0
  %1371 = vmatprep.subr.mxu0 0.0
  %1372 = vmatpush1.msra.mxu0 0.0
  %1373 = vmatprep.subr.mxu0 0.0
  %1374 = vmatpush1.msra.mxu0 0.0
  %1375 = vmatprep.subr.mxu0 0.0
  %1376 = vmatpush1.msra.mxu0 0.0
  %1377 = vmatprep.subr.mxu0 0.0
  %1378 = vmatpush1.msra.mxu0 0.0
  %1379 = vmatprep.subr.mxu0 0.0
  %1380 = vmatpush1.msra.mxu0 0.0
  %1381 = vmatprep.subr.mxu0 0.0
  %1382 = vmatpush1.msra.mxu0 0.0
  %1383 = vmatprep.subr.mxu0 0.0
  %1384 = vmatpush1.msra.mxu0 0.0
  %1385 = vmatprep.subr.mxu0 0.0
  %1386 = vmatpush1.msra.mxu0 0.0
  %1387 = vmatprep.subr.mxu0 0.0
  %1388 = vmatpush1.msra.mxu0 0.0
  %1389 = vmatprep.mubr.f32.mxu0 0.0
  %1390 = vmatmul.mubr.f32.gmra.mrb[0].mxu0 %v1323
  %v1391 = vpop.f32.mrb[0].mxu0
  %v1392 = vadd.f32 0.0, %v1391
  %v1393 = vpop.f32.mrb[0].mxu0
  %1394 = vdwg.mxu0
  %v1395 = vadd.f32 %v1095, %v1392
  %v1396 = vxor.u32 %v1395, 2147483648
  %v1397 = vmul.f32 %v1396, 1.442695
  %v1398 = vpow.pop %v1397
  %v1399 = vadd.f32 %v1398, 1.0
  %v1400 = vrcp.pop %v1399
  %v1401 = vmul.f32 1.0, %v1400
  %v1402 = vtanh.pop %v1395
  %v1403 = vsel %vm36, %v1402, %v1401
  %v1404 = vmul.f32 %v1403, %v1313
  %1406 = vrot.lane.b32.xlu0 %v1403, 64
  %v1407 = vpop.permute.xlu0 %1406
  %v1409 = vmul.f32 %v1403, %v1407
  %1411 = vrot.lane.b32.xlu0 %v1409, 32
  %v1412 = vpop.permute.xlu0 %1411
  %v1414 = vadd.f32 %v1404, %v1412
  %v1415 = vtanh.pop %v1414
  %1417 = vrot.lane.b32.xlu0 %v1415, 64
  %v1418 = vpop.permute.xlu0 %1417
  %v1420 = vmul.f32 %v1403, %v1418
  %1422 = vrot.lane.b32.xlu0 %v1420, 32
  %v1423 = vpop.permute.xlu0 %1422
  %v1424 = vsel %vm191, %v1423, 0
  %1426 = vmatprep.subr.mxu0 0.0
  %1427 = vmatpush1.msra.mxu0 %v1002
  %1428 = vmatprep.subr.mxu0 0.0
  %1429 = vmatpush1.msra.mxu0 %v1003
  %1430 = vmatprep.subr.mxu0 0.0
  %1431 = vmatpush1.msra.mxu0 %v1004
  %1432 = vmatprep.subr.mxu0 0.0
  %1433 = vmatpush1.msra.mxu0 %v1005
  %1434 = vmatprep.subr.mxu0 0.0
  %1435 = vmatpush1.msra.mxu0 0.0
  %1436 = vmatprep.subr.mxu0 0.0
  %1437 = vmatpush1.msra.mxu0 0.0
  %1438 = vmatprep.subr.mxu0 0.0
  %1439 = vmatpush1.msra.mxu0 0.0
  %1440 = vmatprep.subr.mxu0 0.0
  %1441 = vmatpush1.msra.mxu0 0.0
  %1442 = vmatprep.subr.mxu0 0.0
  %1443 = vmatpush1.msra.mxu0 0.0
  %1444 = vmatprep.subr.mxu0 0.0
  %1445 = vmatpush1.msra.mxu0 0.0
  %1446 = vmatprep.subr.mxu0 0.0
  %1447 = vmatpush1.msra.mxu0 0.0
  %1448 = vmatprep.subr.mxu0 0.0
  %1449 = vmatpush1.msra.mxu0 0.0
  %1450 = vmatprep.subr.mxu0 0.0
  %1451 = vmatpush1.msra.mxu0 0.0
  %1452 = vmatprep.subr.mxu0 0.0
  %1453 = vmatpush1.msra.mxu0 0.0
  %1454 = vmatprep.subr.mxu0 0.0
  %1455 = vmatpush1.msra.mxu0 0.0
  %1456 = vmatprep.subr.mxu0 0.0
  %1457 = vmatpush1.msra.mxu0 0.0
  %1458 = vmatprep.subr.mxu0 0.0
  %1459 = vmatpush1.msra.mxu0 0.0
  %1460 = vmatprep.subr.mxu0 0.0
  %1461 = vmatpush1.msra.mxu0 0.0
  %1462 = vmatprep.subr.mxu0 0.0
  %1463 = vmatpush1.msra.mxu0 0.0
  %1464 = vmatprep.subr.mxu0 0.0
  %1465 = vmatpush1.msra.mxu0 0.0
  %1466 = vmatprep.subr.mxu0 0.0
  %1467 = vmatpush1.msra.mxu0 0.0
  %1468 = vmatprep.subr.mxu0 0.0
  %1469 = vmatpush1.msra.mxu0 0.0
  %1470 = vmatprep.subr.mxu0 0.0
  %1471 = vmatpush1.msra.mxu0 0.0
  %1472 = vmatprep.subr.mxu0 0.0
  %1473 = vmatpush1.msra.mxu0 0.0
  %1474 = vmatprep.subr.mxu0 0.0
  %1475 = vmatpush1.msra.mxu0 0.0
  %1476 = vmatprep.subr.mxu0 0.0
  %1477 = vmatpush1.msra.mxu0 0.0
  %1478 = vmatprep.subr.mxu0 0.0
  %1479 = vmatpush1.msra.mxu0 0.0
  %1480 = vmatprep.subr.mxu0 0.0
  %1481 = vmatpush1.msra.mxu0 0.0
  %1482 = vmatprep.subr.mxu0 0.0
  %1483 = vmatpush1.msra.mxu0 0.0
  %1484 = vmatprep.subr.mxu0 0.0
  %1485 = vmatpush1.msra.mxu0 0.0
  %1486 = vmatprep.subr.mxu0 0.0
  %1487 = vmatpush1.msra.mxu0 0.0
  %1488 = vmatprep.subr.mxu0 0.0
  %1489 = vmatpush1.msra.mxu0 0.0
  %1490 = vmatprep.mubr.f32.mxu0 0.0
  %1491 = vmatmul.mubr.f32.gmra.mrb[0].mxu0 %v1424
  %v1492 = vpop.f32.mrb[0].mxu0
  %v1493 = vadd.f32 0.0, %v1492
  %v1494 = vpop.f32.mrb[0].mxu0
  %1495 = vdwg.mxu0
  %v1496 = vadd.f32 %v1100, %v1493
  %v1497 = vxor.u32 %v1496, 2147483648
  %v1498 = vmul.f32 %v1497, 1.442695
  %v1499 = vpow.pop %v1498
  %v1500 = vadd.f32 %v1499, 1.0
  %v1501 = vrcp.pop %v1500
  %v1502 = vmul.f32 1.0, %v1501
  %v1503 = vtanh.pop %v1496
  %v1504 = vsel %vm36, %v1503, %v1502
  %v1505 = vmul.f32 %v1504, %v1414
  %1507 = vrot.lane.b32.xlu0 %v1504, 64
  %v1508 = vpop.permute.xlu0 %1507
  %v1510 = vmul.f32 %v1504, %v1508
  %1512 = vrot.lane.b32.xlu0 %v1510, 32
  %v1513 = vpop.permute.xlu0 %1512
  %v1515 = vadd.f32 %v1505, %v1513
  %v1516 = vtanh.pop %v1515
  %1518 = vrot.lane.b32.xlu0 %v1516, 64
  %v1519 = vpop.permute.xlu0 %1518
  %v1521 = vmul.f32 %v1504, %v1519
  %1523 = vrot.lane.b32.xlu0 %v1521, 32
  %v1524 = vpop.permute.xlu0 %1523
  %v1525 = vsel %vm191, %v1524, 0
  %1527 = vmatprep.subr.mxu0 0.0
  %1528 = vmatpush1.msra.mxu0 %v1002
  %1529 = vmatprep.subr.mxu0 0.0
  %1530 = vmatpush1.msra.mxu0 %v1003
  %1531 = vmatprep.subr.mxu0 0.0
  %1532 = vmatpush1.msra.mxu0 %v1004
  %1533 = vmatprep.subr.mxu0 0.0
  %1534 = vmatpush1.msra.mxu0 %v1005
  %1535 = vmatprep.subr.mxu0 0.0
  %1536 = vmatpush1.msra.mxu0 0.0
  %1537 = vmatprep.subr.mxu0 0.0
  %1538 = vmatpush1.msra.mxu0 0.0
  %1539 = vmatprep.subr.mxu0 0.0
  %1540 = vmatpush1.msra.mxu0 0.0
  %1541 = vmatprep.subr.mxu0 0.0
  %1542 = vmatpush1.msra.mxu0 0.0
  %1543 = vmatprep.subr.mxu0 0.0
  %1544 = vmatpush1.msra.mxu0 0.0
  %1545 = vmatprep.subr.mxu0 0.0
  %1546 = vmatpush1.msra.mxu0 0.0
  %1547 = vmatprep.subr.mxu0 0.0
  %1548 = vmatpush1.msra.mxu0 0.0
  %1549 = vmatprep.subr.mxu0 0.0
  %1550 = vmatpush1.msra.mxu0 0.0
  %1551 = vmatprep.subr.mxu0 0.0
  %1552 = vmatpush1.msra.mxu0 0.0
  %1553 = vmatprep.subr.mxu0 0.0
  %1554 = vmatpush1.msra.mxu0 0.0
  %1555 = vmatprep.subr.mxu0 0.0
  %1556 = vmatpush1.msra.mxu0 0.0
  %1557 = vmatprep.subr.mxu0 0.0
  %1558 = vmatpush1.msra.mxu0 0.0
  %1559 = vmatprep.subr.mxu0 0.0
  %1560 = vmatpush1.msra.mxu0 0.0
  %1561 = vmatprep.subr.mxu0 0.0
  %1562 = vmatpush1.msra.mxu0 0.0
  %1563 = vmatprep.subr.mxu0 0.0
  %1564 = vmatpush1.msra.mxu0 0.0
  %1565 = vmatprep.subr.mxu0 0.0
  %1566 = vmatpush1.msra.mxu0 0.0
  %1567 = vmatprep.subr.mxu0 0.0
  %1568 = vmatpush1.msra.mxu0 0.0
  %1569 = vmatprep.subr.mxu0 0.0
  %1570 = vmatpush1.msra.mxu0 0.0
  %1571 = vmatprep.subr.mxu0 0.0
  %1572 = vmatpush1.msra.mxu0 0.0
  %1573 = vmatprep.subr.mxu0 0.0
  %1574 = vmatpush1.msra.mxu0 0.0
  %1575 = vmatprep.subr.mxu0 0.0
  %1576 = vmatpush1.msra.mxu0 0.0
  %1577 = vmatprep.subr.mxu0 0.0
  %1578 = vmatpush1.msra.mxu0 0.0
  %1579 = vmatprep.subr.mxu0 0.0
  %1580 = vmatpush1.msra.mxu0 0.0
  %1581 = vmatprep.subr.mxu0 0.0
  %1582 = vmatpush1.msra.mxu0 0.0
  %1583 = vmatprep.subr.mxu0 0.0
  %1584 = vmatpush1.msra.mxu0 0.0
  %1585 = vmatprep.subr.mxu0 0.0
  %1586 = vmatpush1.msra.mxu0 0.0
  %1587 = vmatprep.subr.mxu0 0.0
  %1588 = vmatpush1.msra.mxu0 0.0
  %1589 = vmatprep.subr.mxu0 0.0
  %1590 = vmatpush1.msra.mxu0 0.0
  %1591 = vmatprep.mubr.f32.mxu0 0.0
  %1592 = vmatmul.mubr.f32.gmra.mrb[0].mxu0 %v1525
  %v1593 = vpop.f32.mrb[0].mxu0
  %v1594 = vadd.f32 0.0, %v1593
  %v1595 = vpop.f32.mrb[0].mxu0
  %1596 = vdwg.mxu0
  %v1597 = vadd.f32 %v1105, %v1594
  %v1598 = vxor.u32 %v1597, 2147483648
  %v1599 = vmul.f32 %v1598, 1.442695
  %v1600 = vpow.pop %v1599
  %v1601 = vadd.f32 %v1600, 1.0
  %v1602 = vrcp.pop %v1601
  %v1603 = vmul.f32 1.0, %v1602
  %v1604 = vtanh.pop %v1597
  %v1605 = vsel %vm36, %v1604, %v1603
  %v1606 = vmul.f32 %v1605, %v1515
  %1608 = vrot.lane.b32.xlu0 %v1605, 64
  %v1609 = vpop.permute.xlu0 %1608
  %v1611 = vmul.f32 %v1605, %v1609
  %1613 = vrot.lane.b32.xlu0 %v1611, 32
  %v1614 = vpop.permute.xlu0 %1613
  %v1616 = vadd.f32 %v1606, %v1614
  %v1617 = vtanh.pop %v1616
  %1619 = vrot.lane.b32.xlu0 %v1617, 64
  %v1620 = vpop.permute.xlu0 %1619
  %v1622 = vmul.f32 %v1605, %v1620
  %1624 = vrot.lane.b32.xlu0 %v1622, 32
  %v1625 = vpop.permute.xlu0 %1624
  %v1626 = vsel %vm191, %v1625, 0
  %1628 = vmatprep.subr.mxu0 0.0
  %1629 = vmatpush1.msra.mxu0 %v1002
  %1630 = vmatprep.subr.mxu0 0.0
  %1631 = vmatpush1.msra.mxu0 %v1003
  %1632 = vmatprep.subr.mxu0 0.0
  %1633 = vmatpush1.msra.mxu0 %v1004
  %1634 = vmatprep.subr.mxu0 0.0
  %1635 = vmatpush1.msra.mxu0 %v1005
  %1636 = vmatprep.subr.mxu0 0.0
  %1637 = vmatpush1.msra.mxu0 0.0
  %1638 = vmatprep.subr.mxu0 0.0
  %1639 = vmatpush1.msra.mxu0 0.0
  %1640 = vmatprep.subr.mxu0 0.0
  %1641 = vmatpush1.msra.mxu0 0.0
  %1642 = vmatprep.subr.mxu0 0.0
  %1643 = vmatpush1.msra.mxu0 0.0
  %1644 = vmatprep.subr.mxu0 0.0
  %1645 = vmatpush1.msra.mxu0 0.0
  %1646 = vmatprep.subr.mxu0 0.0
  %1647 = vmatpush1.msra.mxu0 0.0
  %1648 = vmatprep.subr.mxu0 0.0
  %1649 = vmatpush1.msra.mxu0 0.0
  %1650 = vmatprep.subr.mxu0 0.0
  %1651 = vmatpush1.msra.mxu0 0.0
  %1652 = vmatprep.subr.mxu0 0.0
  %1653 = vmatpush1.msra.mxu0 0.0
  %1654 = vmatprep.subr.mxu0 0.0
  %1655 = vmatpush1.msra.mxu0 0.0
  %1656 = vmatprep.subr.mxu0 0.0
  %1657 = vmatpush1.msra.mxu0 0.0
  %1658 = vmatprep.subr.mxu0 0.0
  %1659 = vmatpush1.msra.mxu0 0.0
  %1660 = vmatprep.subr.mxu0 0.0
  %1661 = vmatpush1.msra.mxu0 0.0
  %1662 = vmatprep.subr.mxu0 0.0
  %1663 = vmatpush1.msra.mxu0 0.0
  %1664 = vmatprep.subr.mxu0 0.0
  %1665 = vmatpush1.msra.mxu0 0.0
  %1666 = vmatprep.subr.mxu0 0.0
  %1667 = vmatpush1.msra.mxu0 0.0
  %1668 = vmatprep.subr.mxu0 0.0
  %1669 = vmatpush1.msra.mxu0 0.0
  %1670 = vmatprep.subr.mxu0 0.0
  %1671 = vmatpush1.msra.mxu0 0.0
  %1672 = vmatprep.subr.mxu0 0.0
  %1673 = vmatpush1.msra.mxu0 0.0
  %1674 = vmatprep.subr.mxu0 0.0
  %1675 = vmatpush1.msra.mxu0 0.0
  %1676 = vmatprep.subr.mxu0 0.0
  %1677 = vmatpush1.msra.mxu0 0.0
  %1678 = vmatprep.subr.mxu0 0.0
  %1679 = vmatpush1.msra.mxu0 0.0
  %1680 = vmatprep.subr.mxu0 0.0
  %1681 = vmatpush1.msra.mxu0 0.0
  %1682 = vmatprep.subr.mxu0 0.0
  %1683 = vmatpush1.msra.mxu0 0.0
  %1684 = vmatprep.subr.mxu0 0.0
  %1685 = vmatpush1.msra.mxu0 0.0
  %1686 = vmatprep.subr.mxu0 0.0
  %1687 = vmatpush1.msra.mxu0 0.0
  %1688 = vmatprep.subr.mxu0 0.0
  %1689 = vmatpush1.msra.mxu0 0.0
  %1690 = vmatprep.subr.mxu0 0.0
  %1691 = vmatpush1.msra.mxu0 0.0
  %1692 = vmatprep.mubr.f32.mxu0 0.0
  %1693 = vmatmul.mubr.f32.gmra.mrb[0].mxu0 %v1626
  %v1694 = vpop.f32.mrb[0].mxu0
  %v1695 = vadd.f32 0.0, %v1694
  %v1696 = vpop.f32.mrb[0].mxu0
  %1697 = vdwg.mxu0
  %v1698 = vadd.f32 %v1110, %v1695
  %v1699 = vxor.u32 %v1698, 2147483648
  %v1700 = vmul.f32 %v1699, 1.442695
  %v1701 = vpow.pop %v1700
  %v1702 = vadd.f32 %v1701, 1.0
  %v1703 = vrcp.pop %v1702
  %v1704 = vmul.f32 1.0, %v1703
  %v1705 = vtanh.pop %v1698
  %v1706 = vsel %vm36, %v1705, %v1704
  %v1707 = vmul.f32 %v1706, %v1616
  %1709 = vrot.lane.b32.xlu0 %v1706, 64
  %v1710 = vpop.permute.xlu0 %1709
  %v1712 = vmul.f32 %v1706, %v1710
  %1714 = vrot.lane.b32.xlu0 %v1712, 32
  %v1715 = vpop.permute.xlu0 %1714
  %v1717 = vadd.f32 %v1707, %v1715
  %v1718 = vtanh.pop %v1717
  %1720 = vrot.lane.b32.xlu0 %v1718, 64
  %v1721 = vpop.permute.xlu0 %1720
  %v1723 = vmul.f32 %v1706, %v1721
  %1725 = vrot.lane.b32.xlu0 %v1723, 32
  %v1726 = vpop.permute.xlu0 %1725
  %v1727 = vsel %vm191, %v1726, 0
  %1729 = vmatprep.subr.mxu0 0.0
  %1730 = vmatpush1.msra.mxu0 %v1002
  %1731 = vmatprep.subr.mxu0 0.0
  %1732 = vmatpush1.msra.mxu0 %v1003
  %1733 = vmatprep.subr.mxu0 0.0
  %1734 = vmatpush1.msra.mxu0 %v1004
  %1735 = vmatprep.subr.mxu0 0.0
  %1736 = vmatpush1.msra.mxu0 %v1005
  %1737 = vmatprep.subr.mxu0 0.0
  %1738 = vmatpush1.msra.mxu0 0.0
  %1739 = vmatprep.subr.mxu0 0.0
  %1740 = vmatpush1.msra.mxu0 0.0
  %1741 = vmatprep.subr.mxu0 0.0
  %1742 = vmatpush1.msra.mxu0 0.0
  %1743 = vmatprep.subr.mxu0 0.0
  %1744 = vmatpush1.msra.mxu0 0.0
  %1745 = vmatprep.subr.mxu0 0.0
  %1746 = vmatpush1.msra.mxu0 0.0
  %1747 = vmatprep.subr.mxu0 0.0
  %1748 = vmatpush1.msra.mxu0 0.0
  %1749 = vmatprep.subr.mxu0 0.0
  %1750 = vmatpush1.msra.mxu0 0.0
  %1751 = vmatprep.subr.mxu0 0.0
  %1752 = vmatpush1.msra.mxu0 0.0
  %1753 = vmatprep.subr.mxu0 0.0
  %1754 = vmatpush1.msra.mxu0 0.0
  %1755 = vmatprep.subr.mxu0 0.0
  %1756 = vmatpush1.msra.mxu0 0.0
  %1757 = vmatprep.subr.mxu0 0.0
  %1758 = vmatpush1.msra.mxu0 0.0
  %1759 = vmatprep.subr.mxu0 0.0
  %1760 = vmatpush1.msra.mxu0 0.0
  %1761 = vmatprep.subr.mxu0 0.0
  %1762 = vmatpush1.msra.mxu0 0.0
  %1763 = vmatprep.subr.mxu0 0.0
  %1764 = vmatpush1.msra.mxu0 0.0
  %1765 = vmatprep.subr.mxu0 0.0
  %1766 = vmatpush1.msra.mxu0 0.0
  %1767 = vmatprep.subr.mxu0 0.0
  %1768 = vmatpush1.msra.mxu0 0.0
  %1769 = vmatprep.subr.mxu0 0.0
  %1770 = vmatpush1.msra.mxu0 0.0
  %1771 = vmatprep.subr.mxu0 0.0
  %1772 = vmatpush1.msra.mxu0 0.0
  %1773 = vmatprep.subr.mxu0 0.0
  %1774 = vmatpush1.msra.mxu0 0.0
  %1775 = vmatprep.subr.mxu0 0.0
  %1776 = vmatpush1.msra.mxu0 0.0
  %1777 = vmatprep.subr.mxu0 0.0
  %1778 = vmatpush1.msra.mxu0 0.0
  %1779 = vmatprep.subr.mxu0 0.0
  %1780 = vmatpush1.msra.mxu0 0.0
  %1781 = vmatprep.subr.mxu0 0.0
  %1782 = vmatpush1.msra.mxu0 0.0
  %1783 = vmatprep.subr.mxu0 0.0
  %1784 = vmatpush1.msra.mxu0 0.0
  %1785 = vmatprep.subr.mxu0 0.0
  %1786 = vmatpush1.msra.mxu0 0.0
  %1787 = vmatprep.subr.mxu0 0.0
  %1788 = vmatpush1.msra.mxu0 0.0
  %1789 = vmatprep.subr.mxu0 0.0
  %1790 = vmatpush1.msra.mxu0 0.0
  %1791 = vmatprep.subr.mxu0 0.0
  %1792 = vmatpush1.msra.mxu0 0.0
  %1793 = vmatprep.mubr.f32.mxu0 0.0
  %1794 = vmatmul.mubr.f32.gmra.mrb[0].mxu0 %v1727
  %v1795 = vpop.f32.mrb[0].mxu0
  %v1796 = vadd.f32 0.0, %v1795
  %v1797 = vpop.f32.mrb[0].mxu0
  %1798 = vdwg.mxu0
  %v1799 = vadd.f32 %v1115, %v1796
  %v1800 = vxor.u32 %v1799, 2147483648
  %v1801 = vmul.f32 %v1800, 1.442695
  %v1802 = vpow.pop %v1801
  %v1803 = vadd.f32 %v1802, 1.0
  %v1804 = vrcp.pop %v1803
  %v1805 = vmul.f32 1.0, %v1804
  %v1806 = vtanh.pop %v1799
  %v1807 = vsel %vm36, %v1806, %v1805
  %v1808 = vmul.f32 %v1807, %v1717
  %1810 = vrot.lane.b32.xlu0 %v1807, 64
  %v1811 = vpop.permute.xlu0 %1810
  %v1813 = vmul.f32 %v1807, %v1811
  %1815 = vrot.lane.b32.xlu0 %v1813, 32
  %v1816 = vpop.permute.xlu0 %1815
  %v1818 = vadd.f32 %v1808, %v1816
  %v1819 = vtanh.pop %v1818
  %1821 = vrot.lane.b32.xlu0 %v1819, 64
  %v1822 = vpop.permute.xlu0 %1821
  %v1824 = vmul.f32 %v1807, %v1822
  %1826 = vrot.lane.b32.xlu0 %v1824, 32
  %v1827 = vpop.permute.xlu0 %1826
  %v1828 = vsel %vm191, %v1827, 0
  %1830 = vmatprep.subr.mxu0 0.0
  %1831 = vmatpush1.msra.mxu0 %v1002
  %1832 = vmatprep.subr.mxu0 0.0
  %1833 = vmatpush1.msra.mxu0 %v1003
  %1834 = vmatprep.subr.mxu0 0.0
  %1835 = vmatpush1.msra.mxu0 %v1004
  %1836 = vmatprep.subr.mxu0 0.0
  %1837 = vmatpush1.msra.mxu0 %v1005
  %1838 = vmatprep.subr.mxu0 0.0
  %1839 = vmatpush1.msra.mxu0 0.0
  %1840 = vmatprep.subr.mxu0 0.0
  %1841 = vmatpush1.msra.mxu0 0.0
  %1842 = vmatprep.subr.mxu0 0.0
  %1843 = vmatpush1.msra.mxu0 0.0
  %1844 = vmatprep.subr.mxu0 0.0
  %1845 = vmatpush1.msra.mxu0 0.0
  %1846 = vmatprep.subr.mxu0 0.0
  %1847 = vmatpush1.msra.mxu0 0.0
  %1848 = vmatprep.subr.mxu0 0.0
  %1849 = vmatpush1.msra.mxu0 0.0
  %1850 = vmatprep.subr.mxu0 0.0
  %1851 = vmatpush1.msra.mxu0 0.0
  %1852 = vmatprep.subr.mxu0 0.0
  %1853 = vmatpush1.msra.mxu0 0.0
  %1854 = vmatprep.subr.mxu0 0.0
  %1855 = vmatpush1.msra.mxu0 0.0
  %1856 = vmatprep.subr.mxu0 0.0
  %1857 = vmatpush1.msra.mxu0 0.0
  %1858 = vmatprep.subr.mxu0 0.0
  %1859 = vmatpush1.msra.mxu0 0.0
  %1860 = vmatprep.subr.mxu0 0.0
  %1861 = vmatpush1.msra.mxu0 0.0
  %1862 = vmatprep.subr.mxu0 0.0
  %1863 = vmatpush1.msra.mxu0 0.0
  %1864 = vmatprep.subr.mxu0 0.0
  %1865 = vmatpush1.msra.mxu0 0.0
  %1866 = vmatprep.subr.mxu0 0.0
  %1867 = vmatpush1.msra.mxu0 0.0
  %1868 = vmatprep.subr.mxu0 0.0
  %1869 = vmatpush1.msra.mxu0 0.0
  %1870 = vmatprep.subr.mxu0 0.0
  %1871 = vmatpush1.msra.mxu0 0.0
  %1872 = vmatprep.subr.mxu0 0.0
  %1873 = vmatpush1.msra.mxu0 0.0
  %1874 = vmatprep.subr.mxu0 0.0
  %1875 = vmatpush1.msra.mxu0 0.0
  %1876 = vmatprep.subr.mxu0 0.0
  %1877 = vmatpush1.msra.mxu0 0.0
  %1878 = vmatprep.subr.mxu0 0.0
  %1879 = vmatpush1.msra.mxu0 0.0
  %1880 = vmatprep.subr.mxu0 0.0
  %1881 = vmatpush1.msra.mxu0 0.0
  %1882 = vmatprep.subr.mxu0 0.0
  %1883 = vmatpush1.msra.mxu0 0.0
  %1884 = vmatprep.subr.mxu0 0.0
  %1885 = vmatpush1.msra.mxu0 0.0
  %1886 = vmatprep.subr.mxu0 0.0
  %1887 = vmatpush1.msra.mxu0 0.0
  %1888 = vmatprep.subr.mxu0 0.0
  %1889 = vmatpush1.msra.mxu0 0.0
  %1890 = vmatprep.subr.mxu0 0.0
  %1891 = vmatpush1.msra.mxu0 0.0
  %1892 = vmatprep.subr.mxu0 0.0
  %1893 = vmatpush1.msra.mxu0 0.0
  %1894 = vmatprep.mubr.f32.mxu0 0.0
  %1895 = vmatmul.mubr.f32.gmra.mrb[0].mxu0 %v1828
  %v1896 = vpop.f32.mrb[0].mxu0
  %v1897 = vadd.f32 0.0, %v1896
  %v1898 = vpop.f32.mrb[0].mxu0
  %1899 = vdwg.mxu0
  %v1900 = vadd.f32 %v1120, %v1897
  %v1901 = vxor.u32 %v1900, 2147483648
  %v1902 = vmul.f32 %v1901, 1.442695
  %v1903 = vpow.pop %v1902
  %v1904 = vadd.f32 %v1903, 1.0
  %v1905 = vrcp.pop %v1904
  %v1906 = vmul.f32 1.0, %v1905
  %v1907 = vtanh.pop %v1900
  %v1908 = vsel %vm36, %v1907, %v1906
  %v1909 = vmul.f32 %v1908, %v1818
  %1911 = vrot.lane.b32.xlu0 %v1908, 64
  %v1912 = vpop.permute.xlu0 %1911
  %v1914 = vmul.f32 %v1908, %v1912
  %1916 = vrot.lane.b32.xlu0 %v1914, 32
  %v1917 = vpop.permute.xlu0 %1916
  %v1919 = vadd.f32 %v1909, %v1917
  %v1920 = vtanh.pop %v1919
  %1922 = vrot.lane.b32.xlu0 %v1920, 64
  %v1923 = vpop.permute.xlu0 %1922
  %v1925 = vmul.f32 %v1908, %v1923
  %v1926 = vld [vmem:[%s7] sm:$0xff]
  %v1927 = vld [vmem:[%s7 + $0x8] sm:$0xff]
  %v1928 = vld [vmem:[%s7 + $0x10] sm:$0xff]
  %v1929 = vld [vmem:[%s7 + $0x18] sm:$0xff]
  %v1930 = vld [vmem:[%s8] sm:$0x1]
  %v1932 = vlaneseq
  %v1933 = vshrl.u32 %v1932, 7
  %v1934 = vsub.s32 0, %v1933
  %v1935 = vrot.slane %v1930, %v1934
  %1938 = vrot.lane.b32.xlu0 %v1925, 32
  %v1939 = vpop.permute.xlu0 %1938
  %v1940 = vsel %vm191, %v1939, 0
  %1942 = vmatprep.subr.mxu0 0.0
  %1943 = vmatpush1.msra.mxu0 %v1926
  %1944 = vmatprep.subr.mxu0 0.0
  %1945 = vmatpush1.msra.mxu0 %v1927
  %1946 = vmatprep.subr.mxu0 0.0
  %1947 = vmatpush1.msra.mxu0 %v1928
  %1948 = vmatprep.subr.mxu0 0.0
  %1949 = vmatpush1.msra.mxu0 %v1929
  %1950 = vmatprep.subr.mxu0 0.0
  %1951 = vmatpush1.msra.mxu0 0.0
  %1952 = vmatprep.subr.mxu0 0.0
  %1953 = vmatpush1.msra.mxu0 0.0
  %1954 = vmatprep.subr.mxu0 0.0
  %1955 = vmatpush1.msra.mxu0 0.0
  %1956 = vmatprep.subr.mxu0 0.0
  %1957 = vmatpush1.msra.mxu0 0.0
  %1958 = vmatprep.subr.mxu0 0.0
  %1959 = vmatpush1.msra.mxu0 0.0
  %1960 = vmatprep.subr.mxu0 0.0
  %1961 = vmatpush1.msra.mxu0 0.0
  %1962 = vmatprep.subr.mxu0 0.0
  %1963 = vmatpush1.msra.mxu0 0.0
  %1964 = vmatprep.subr.mxu0 0.0
  %1965 = vmatpush1.msra.mxu0 0.0
  %1966 = vmatprep.subr.mxu0 0.0
  %1967 = vmatpush1.msra.mxu0 0.0
  %1968 = vmatprep.subr.mxu0 0.0
  %1969 = vmatpush1.msra.mxu0 0.0
  %1970 = vmatprep.subr.mxu0 0.0
  %1971 = vmatpush1.msra.mxu0 0.0
  %1972 = vmatprep.subr.mxu0 0.0
  %1973 = vmatpush1.msra.mxu0 0.0
  %1974 = vmatprep.subr.mxu0 0.0
  %1975 = vmatpush1.msra.mxu0 0.0
  %1976 = vmatprep.subr.mxu0 0.0
  %1977 = vmatpush1.msra.mxu0 0.0
  %1978 = vmatprep.subr.mxu0 0.0
  %1979 = vmatpush1.msra.mxu0 0.0
  %1980 = vmatprep.subr.mxu0 0.0
  %1981 = vmatpush1.msra.mxu0 0.0
  %1982 = vmatprep.subr.mxu0 0.0
  %1983 = vmatpush1.msra.mxu0 0.0
  %1984 = vmatprep.subr.mxu0 0.0
  %1985 = vmatpush1.msra.mxu0 0.0
  %1986 = vmatprep.subr.mxu0 0.0
  %1987 = vmatpush1.msra.mxu0 0.0
  %1988 = vmatprep.subr.mxu0 0.0
  %1989 = vmatpush1.msra.mxu0 0.0
  %1990 = vmatprep.subr.mxu0 0.0
  %1991 = vmatpush1.msra.mxu0 0.0
  %1992 = vmatprep.subr.mxu0 0.0
  %1993 = vmatpush1.msra.mxu0 0.0
  %1994 = vmatprep.subr.mxu0 0.0
  %1995 = vmatpush1.msra.mxu0 0.0
  %1996 = vmatprep.subr.mxu0 0.0
  %1997 = vmatpush1.msra.mxu0 0.0
  %1998 = vmatprep.subr.mxu0 0.0
  %1999 = vmatpush1.msra.mxu0 0.0
  %2000 = vmatprep.subr.mxu0 0.0
  %2001 = vmatpush1.msra.mxu0 0.0
  %2002 = vmatprep.subr.mxu0 0.0
  %2003 = vmatpush1.msra.mxu0 0.0
  %2004 = vmatprep.subr.mxu0 0.0
  %2005 = vmatpush1.msra.mxu0 0.0
  %2006 = vmatprep.mubr.f32.mxu0 0.0
  %2007 = vmatmul.mubr.f32.gmra.mrb[0].mxu0 %v1940
  %v2008 = vpop.f32.mrb[0].mxu0
  %v2009 = vadd.f32 %v1935, %v2008
  %v2010 = vpop.f32.mrb[0].mxu0
  %2011 = vdwg.mxu0
  %vm2012 = vcmask 23552
  %2013 = vst.msk [vmem:[%s9] sm:$0xff] %vm2012, %v2009
  // Predicated region
  $region38: #{lstm_model_forward.1} parent=0 // pred_check
    _
  $region39: #{lstm_model_forward.1} parent=0 // pred_check_branch
    %2015 = sbr.rel (0) target = $region41
  $region40: #{lstm_model_forward.1} parent=0 // pred_region
    _
  $region41: #{lstm_model_forward.1} parent=0 // pred_fallthru
    _
  // Predicated region
  $region42: #{lstm_model_forward.1} parent=0 // pred_check
    _
  $region43: #{lstm_model_forward.1} parent=0 // pred_check_branch
    %2017 = sbr.rel (0) target = $region45
  $region44: #{lstm_model_forward.1} parent=0 // pred_region
    _
  $region45: #{lstm_model_forward.1} parent=0 // pred_fallthru
    _

</llo_original>
